<compile_context>
chip_gen: v7x
topology: tpu7x:2x2x1
jax: 0.10.0
libtpu: 0.0.40
codegen_flags: <defaults>
</compile_context>

<pallas_src>
import functools

import jax
import jax.numpy as jnp
import numpy as np
from jax.experimental import pallas as pl
from jax.experimental.pallas import tpu as pltpu


def _round_up(x, m):
    return (x + m - 1) // m * m


def _frnn_kernel(pos_tile_ref, cent_ref, tri_ref, out_ref,
                 carry_scr, best_scr, colbase_scr,
                 *, radius, n_neighbor, n_points):
    """Grid = (batch, s_tiles, n_column_tiles); column-tile axis is sequential."""
    N = n_points                        # real (unpadded) point count == pad sentinel
    K = n_neighbor
    T = pos_tile_ref.shape[2]           # column-tile width (multiple of 128)
    S = best_scr.shape[0]               # centroid-tile height (multiple of 8)

    t = pl.program_id(2)
    r2 = radius * radius

    # ---- once per (batch, s-tile): accumulator + iota init ------------------
    @pl.when(t == 0)
    def _init():
        carry_scr[...] = jnp.zeros_like(carry_scr)
        best_scr[...] = jnp.full_like(best_scr, N)
        colbase_scr[...] = jax.lax.broadcasted_iota(jnp.int32,
                                                    colbase_scr.shape, 1)

    # ---- per column tile: distances, rank, running per-rank min -------------
    centers = cent_ref[0]                                        # (S, 3) f32
    ptile = pos_tile_ref[0]                                      # (3, T) f32

    sqrd = jnp.zeros((S, T), jnp.float32)
    for d in range(3):
        diff = centers[:, d:d + 1] - ptile[d:d + 1, :]           # (S, T)
        sqrd = sqrd + diff * diff

    col = colbase_scr[...] + t * T                               # (1, T) global idx
    valid = (sqrd <= r2) & (col < N)                             # (S, T) bool

    # Exclusive prefix count (rank of each valid point) via strict UPPER-
    # triangular matmul. 0/1 operands in bf16 with f32 accumulation are exact.
    local_rank = jnp.dot(valid.astype(jnp.bfloat16), tri_ref[...],
                         preferred_element_type=jnp.float32)     # (S, T) f32
    rank = carry_scr[...] + local_rank                           # (S, T) f32

    # k-th ascending in-radius index == min global index whose rank == k.
    # Unrolled loop over k on 2-D tiles keeps footprint O(S*T) (no (S,K,T)).
    colval = jnp.where(valid, col, N)                            # (S, T) i32
    for k in range(K):
        cand = jnp.where(rank == float(k), colval, N)            # (S, T) i32
        best_scr[:, k:k + 1] = jnp.minimum(
            best_scr[:, k:k + 1], jnp.min(cand, axis=-1, keepdims=True))

    # Inclusive valid count at the tile's last column == carry for next tile
    # (already implied by the prefix matmul; no extra XLU sum-reduce).
    carry_scr[...] = rank[:, T - 1:T] + valid[:, T - 1:T].astype(jnp.float32)

    # ---- last tile: pad-fix with first neighbor, lane-dense store -----------
    @pl.when(t == pl.num_programs(2) - 1)
    def _store():
        best = best_scr[...]                                     # (S, K_pad) i32
        first = best[:, 0:1]
        out_ref[0] = jnp.where(best == N,
                               jnp.broadcast_to(first, best.shape), best)


def fixed_radius_near_neighbors(pos, centroids, radius, n_neighbor, *,
                                tile_n=512, s_block=256):
    """pos: (B, N, 3) f32, centroids: (B, S) int -> (B, S, n_neighbor) int32."""
    B, N, _ = pos.shape
    S = centroids.shape[1]
    K = int(n_neighbor)

    # Column-tile width: multiple of 128, no larger than N rounded up to 128.
    T = _round_up(min(int(tile_n), _round_up(N, 128)), 128)
    N_pad = _round_up(N, T)
    num_tiles = N_pad // T
    K_pad = _round_up(K, 128)                  # lane-dense output width

    # Centroid-tile height: multiple of 8, capped at s_block (256 fills the
    # v6e/v7x MXU M-dimension).
    S_blk = _round_up(min(int(s_block), _round_up(S, 8)), 8)
    S_pad = _round_up(S, S_blk)
    num_s = S_pad // S_blk

    pos_f32 = pos.astype(jnp.float32)

    # Exact centroid gather in the wrapper (true gather, no MXU involved).
    # Pad S by repeating the last real centroid so padded rows behave like
    # real rows; they are sliced off at the end.
    cent_i = centroids.astype(jnp.int32)
    if S_pad > S:
        cent_i = jnp.pad(cent_i, ((0, 0), (0, S_pad - S)), mode="edge")
    centers = jnp.take_along_axis(
        pos_f32, jnp.broadcast_to(cent_i[:, :, None], (B, S_pad, 3)), axis=1)

    # Coordinates on sublanes, points lane-dense; pad N (guarded by col < N).
    pos_t = jnp.transpose(pos_f32, (0, 2, 1))                    # (B, 3, N)
    if N_pad > N:
        pos_t = jnp.pad(pos_t, ((0, 0), (0, 0), (0, N_pad - N)))

    # Strict UPPER-triangular ("row < col") tile, bf16, DMA'd once, resident.
    tri = jnp.asarray(np.triu(np.ones((T, T), np.float32), 1), jnp.bfloat16)

    # Working-set estimate for the scoped-VMEM limit (small after restructure);
    # cap at 48 MiB to leave headroom on v7x (64 MiB/TC). v5e/v6e (128 MiB)
    # could raise the cap and sweep tile_n=1024 if per-step overhead shows up.
    vmem_est = (
        2 * 3 * T * 4                   # double-buffered (1, 3, T) pos tiles
        + T * T * 2                     # resident triangular constant (bf16)
        + 2 * S_blk * 128 * 4           # centers block (lane padded)
        + 2 * S_blk * K_pad * 4         # output block
        + S_blk * (K_pad + 1) * 4 + T * 4   # scratch
        + 8 * S_blk * T * 4             # per-tile (S_blk, T) temporaries
    )
    vmem_limit = int(min(max(2 * vmem_est, 32 * 2 ** 20), 48 * 2 ** 20))

    kernel = functools.partial(_frnn_kernel, radius=float(radius),
                               n_neighbor=K, n_points=int(N))

    out = pl.pallas_call(
        kernel,
        out_shape=jax.ShapeDtypeStruct((B, S_pad, K_pad), jnp.int32),
        grid=(B, num_s, num_tiles),
        in_specs=[
            pl.BlockSpec((1, 3, T), lambda b, si, t: (b, 0, t)),       # pos tile
            pl.BlockSpec((1, S_blk, 3), lambda b, si, t: (b, si, 0)),  # centers
            pl.BlockSpec((T, T), lambda b, si, t: (0, 0)),             # tri const
        ],
        out_specs=pl.BlockSpec((1, S_blk, K_pad), lambda b, si, t: (b, si, 0)),
        scratch_shapes=[
            pltpu.VMEM((S_blk, 1), jnp.float32),    # running valid count (f32, exact)
            pltpu.VMEM((S_blk, K_pad), jnp.int32),  # running best indices
            pltpu.VMEM((1, T), jnp.int32),          # hoisted base column iota
        ],
        compiler_params=pltpu.CompilerParams(
            dimension_semantics=("parallel", "parallel", "arbitrary"),
            vmem_limit_bytes=vmem_limit,
        ),
    )(pos_t, centers, tri)

    return out[:, :S, :K]


def _reference_frnn(pos, centroids, radius, K):
    """Pure-JAX replica of the PyTorch forward (uses an actual sort)."""
    B, N, _ = pos.shape
    S = centroids.shape[1]
    idx3 = jnp.broadcast_to(centroids[:, :, None].astype(jnp.int32), (B, S, 3))
    center = jnp.take_along_axis(pos, idx3, axis=1)                      # (B, S, 3)
    diff = center[:, :, None, :] - pos[:, None, :, :]                    # (B, S, N, 3)
    sqrd = jnp.sum(diff * diff, axis=-1)                                 # (B, S, N)
    gidx = jnp.broadcast_to(jnp.arange(N, dtype=jnp.int32), (B, S, N))
    gidx = jnp.where(sqrd > radius * radius, N, gidx)
    gidx = jnp.sort(gidx, axis=-1)[:, :, :K]
    first = gidx[:, :, 0:1]
    return jnp.where(gidx == N, first, gidx)


if __name__ == "__main__":
    key = jax.random.PRNGKey(0)
    kp, kc = jax.random.split(key)

    B, N, S, K = 2, 128, 16, 16
    radius = 0.3

    pos = jax.random.uniform(kp, (B, N, 3), dtype=jnp.float32)           # unit cube
    centroids = jax.random.randint(kc, (B, S), 0, N, dtype=jnp.int32)

    out = fixed_radius_near_neighbors(pos, centroids, radius, K)
    out = jax.block_until_ready(out)

    ref = _reference_frnn(pos, centroids, radius, K)
    assert out.shape == (B, S, K) and out.dtype == jnp.int32
    if not np.array_equal(np.asarray(out), np.asarray(ref)):
        raise AssertionError("Pallas ball-query output does not match reference")

    print("KERNEL_OK")
</pallas_src>

<mosaic_0001>
module attributes {stable_mosaic.version = 11 : i64} {
  func.func @_frnn_kernel(%arg0: i32, %arg1: i32, %arg2: i32, %arg3: memref<1x3x128xf32, #tpu.memory_space<vmem>>, %arg4: memref<1x16x3xf32, #tpu.memory_space<vmem>>, %arg5: memref<128x128xbf16, #tpu.memory_space<vmem>>, %arg6: memref<1x16x128xi32, #tpu.memory_space<vmem>>, %arg7: memref<16x1xf32, #tpu.memory_space<vmem>>, %arg8: memref<16x128xi32, #tpu.memory_space<vmem>>, %arg9: memref<1x128xi32, #tpu.memory_space<vmem>>) attributes {dimension_semantics = [#tpu.dimension_semantics<parallel>, #tpu.dimension_semantics<parallel>, #tpu.dimension_semantics<arbitrary>], iteration_bounds = array<i64: 2, 1, 1>, scalar_prefetch = 0 : i64, scratch_operands = 3 : i64, tpu.core_type = #tpu.core_type<tc>, window_params = [{transform_indices = @transform_0, window_bounds = array<i64: 1, 3, 128>}, {transform_indices = @transform_1, window_bounds = array<i64: 1, 16, 3>}, {pipeline_mode = #tpu.pipeline_mode<synchronous>, transform_indices = @transform_2, window_bounds = array<i64: 128, 128>}, {transform_indices = @transform_3, window_bounds = array<i64: 1, 16, 128>}]} {
    %c0_i32 = arith.constant 0 : i32
    %0 = arith.cmpi eq, %arg2, %c0_i32 : i32
    %1 = arith.extui %0 : i1 to i32
    %c0_i32_0 = arith.constant 0 : i32
    %2 = arith.cmpi ne, %1, %c0_i32_0 : i32
    scf.if %2 {
      %cst_117 = arith.constant 0.000000e+00 : f32
      %204 = vector.broadcast %cst_117 : f32 to vector<16x1xf32>
      %c0_118 = arith.constant 0 : index
      %c0_119 = arith.constant 0 : index
      %205 = vector.load %arg7[%c0_118, %c0_119] : memref<16x1xf32, #tpu.memory_space<vmem>>, vector<16x1xf32>
      tpu.vector_store %arg7[%c0_118, %c0_119], %204 {strides = array<i32>} : memref<16x1xf32, #tpu.memory_space<vmem>>, vector<16x1xf32>,
      %c128_i32_120 = arith.constant 128 : i32
      %206 = vector.broadcast %c128_i32_120 : i32 to vector<16x128xi32>
      %c0_121 = arith.constant 0 : index
      %c0_122 = arith.constant 0 : index
      %207 = vector.load %arg8[%c0_121, %c0_122] : memref<16x128xi32, #tpu.memory_space<vmem>>, vector<16x128xi32>
      tpu.vector_store %arg8[%c0_121, %c0_122], %206 {strides = array<i32>} : memref<16x128xi32, #tpu.memory_space<vmem>>, vector<16x128xi32>,
      %208 = tpu.iota {dimensions = array<i32: 1>} : vector<1x128xi32>
      %c0_123 = arith.constant 0 : index
      %c0_124 = arith.constant 0 : index
      %209 = vector.load %arg9[%c0_123, %c0_124] : memref<1x128xi32, #tpu.memory_space<vmem>>, vector<1x128xi32>
      tpu.vector_store %arg9[%c0_123, %c0_124], %208 {strides = array<i32>} : memref<1x128xi32, #tpu.memory_space<vmem>>, vector<1x128xi32>,
    } else {
    }
    %c0 = arith.constant 0 : index
    %c0_1 = arith.constant 0 : index
    %c0_2 = arith.constant 0 : index
    %3 = vector.load %arg4[%c0, %c0_1, %c0_2] : memref<1x16x3xf32, #tpu.memory_space<vmem>>, vector<1x16x3xf32>
    %4 = vector.shape_cast %3 : vector<1x16x3xf32> to vector<16x3xf32>
    %c0_3 = arith.constant 0 : index
    %c0_4 = arith.constant 0 : index
    %c0_5 = arith.constant 0 : index
    %5 = vector.load %arg3[%c0_3, %c0_4, %c0_5] : memref<1x3x128xf32, #tpu.memory_space<vmem>>, vector<1x3x128xf32>
    %6 = vector.shape_cast %5 : vector<1x3x128xf32> to vector<3x128xf32>
    %cst = arith.constant 0.000000e+00 : f32
    %7 = vector.broadcast %cst : f32 to vector<16x128xf32>
    %8 = vector.extract_strided_slice %4 {offsets = [0, 0], sizes = [16, 1], strides = [1, 1]} : vector<16x3xf32> to vector<16x1xf32>
    %9 = vector.extract_strided_slice %6 {offsets = [0, 0], sizes = [1, 128], strides = [1, 1]} : vector<3x128xf32> to vector<1x128xf32>
    %10 = vector.broadcast %8 : vector<16x1xf32> to vector<16x128xf32>
    %11 = vector.broadcast %9 : vector<1x128xf32> to vector<16x128xf32>
    %12 = arith.subf %10, %11 : vector<16x128xf32>
    %13 = arith.mulf %12, %12 : vector<16x128xf32>
    %14 = arith.addf %7, %13 : vector<16x128xf32>
    %15 = vector.extract_strided_slice %4 {offsets = [0, 1], sizes = [16, 1], strides = [1, 1]} : vector<16x3xf32> to vector<16x1xf32>
    %16 = vector.extract_strided_slice %6 {offsets = [1, 0], sizes = [1, 128], strides = [1, 1]} : vector<3x128xf32> to vector<1x128xf32>
    %17 = vector.broadcast %15 : vector<16x1xf32> to vector<16x128xf32>
    %18 = vector.broadcast %16 : vector<1x128xf32> to vector<16x128xf32>
    %19 = arith.subf %17, %18 : vector<16x128xf32>
    %20 = arith.mulf %19, %19 : vector<16x128xf32>
    %21 = arith.addf %14, %20 : vector<16x128xf32>
    %22 = vector.extract_strided_slice %4 {offsets = [0, 2], sizes = [16, 1], strides = [1, 1]} : vector<16x3xf32> to vector<16x1xf32>
    %23 = vector.extract_strided_slice %6 {offsets = [2, 0], sizes = [1, 128], strides = [1, 1]} : vector<3x128xf32> to vector<1x128xf32>
    %24 = vector.broadcast %22 : vector<16x1xf32> to vector<16x128xf32>
    %25 = vector.broadcast %23 : vector<1x128xf32> to vector<16x128xf32>
    %26 = arith.subf %24, %25 : vector<16x128xf32>
    %27 = arith.mulf %26, %26 : vector<16x128xf32>
    %28 = arith.addf %21, %27 : vector<16x128xf32>
    %c0_6 = arith.constant 0 : index
    %c0_7 = arith.constant 0 : index
    %29 = vector.load %arg9[%c0_6, %c0_7] : memref<1x128xi32, #tpu.memory_space<vmem>>, vector<1x128xi32>
    %c128_i32 = arith.constant 128 : i32
    %30 = arith.muli %arg2, %c128_i32 : i32
    %31 = vector.broadcast %30 : i32 to vector<1x128xi32>
    %32 = arith.addi %29, %31 : vector<1x128xi32>
    %cst_8 = arith.constant 9.000000e-02 : f32
    %33 = vector.broadcast %cst_8 : f32 to vector<16x128xf32>
    %34 = arith.cmpf ole, %28, %33 : vector<16x128xf32>
    %c128_i32_9 = arith.constant 128 : i32
    %35 = vector.broadcast %c128_i32_9 : i32 to vector<1x128xi32>
    %36 = arith.cmpi slt, %32, %35 : vector<1x128xi32>
    %37 = vector.broadcast %36 : vector<1x128xi1> to vector<16x128xi1>
    %38 = arith.andi %34, %37 : vector<16x128xi1>
    %39 = arith.extui %38 : vector<16x128xi1> to vector<16x128xi32>
    %40 = arith.sitofp %39 : vector<16x128xi32> to vector<16x128xf32>
    %41 = arith.truncf %40 : vector<16x128xf32> to vector<16x128xbf16>
    %c0_10 = arith.constant 0 : index
    %c0_11 = arith.constant 0 : index
    %42 = vector.load %arg5[%c0_10, %c0_11] : memref<128x128xbf16, #tpu.memory_space<vmem>>, vector<128x128xbf16>
    %cst_12 = arith.constant dense<0.000000e+00> : vector<16x128xf32>
    %43 = tpu.matmul %41, %42, %cst_12 {dimension_numbers = #tpu.dot_dimension_numbers<[1], [0], [0], [1], [0, 0, 1, 1], [], []>} : vector<16x128xbf16>, vector<128x128xbf16>, vector<16x128xf32> -> vector<16x128xf32>
    %c0_13 = arith.constant 0 : index
    %c0_14 = arith.constant 0 : index
    %44 = vector.load %arg7[%c0_13, %c0_14] : memref<16x1xf32, #tpu.memory_space<vmem>>, vector<16x1xf32>
    %45 = vector.broadcast %44 : vector<16x1xf32> to vector<16x128xf32>
    %46 = arith.addf %45, %43 : vector<16x128xf32>
    %c128_i32_15 = arith.constant 128 : i32
    %47 = vector.shape_cast %32 : vector<1x128xi32> to vector<1x128xi32>
    %48 = vector.broadcast %47 : vector<1x128xi32> to vector<16x128xi32>
    %49 = vector.broadcast %c128_i32_15 : i32 to vector<16x128xi32>
    %50 = arith.select %38, %48, %49 : vector<16x128xi1>, vector<16x128xi32>
    %cst_16 = arith.constant 0.000000e+00 : f32
    %51 = vector.broadcast %cst_16 : f32 to vector<16x128xf32>
    %52 = arith.cmpf oeq, %46, %51 : vector<16x128xf32>
    %c128_i32_17 = arith.constant 128 : i32
    %53 = vector.broadcast %c128_i32_17 : i32 to vector<16x128xi32>
    %54 = arith.select %52, %50, %53 : vector<16x128xi1>, vector<16x128xi32>
    %c0_18 = arith.constant 0 : index
    %c0_19 = arith.constant 0 : index
    %55 = vector.load %arg8[%c0_18, %c0_19] : memref<16x128xi32, #tpu.memory_space<vmem>>, vector<16x1xi32>
    %cst_20 = arith.constant dense<2147483647> : vector<16xi32>
    %56 = vector.multi_reduction <minsi>, %54, %cst_20 [1] : vector<16x128xi32> to vector<16xi32>
    %57 = vector.shape_cast %56 : vector<16xi32> to vector<16x1xi32>
    %58 = arith.minsi %55, %57 : vector<16x1xi32>
    %c0_21 = arith.constant 0 : index
    %c0_22 = arith.constant 0 : index
    %59 = vector.load %arg8[%c0_21, %c0_22] : memref<16x128xi32, #tpu.memory_space<vmem>>, vector<16x1xi32>
    tpu.vector_store %arg8[%c0_21, %c0_22], %58 {strides = array<i32>} : memref<16x128xi32, #tpu.memory_space<vmem>>, vector<16x1xi32>,
    %cst_23 = arith.constant 1.000000e+00 : f32
    %60 = vector.broadcast %cst_23 : f32 to vector<16x128xf32>
    %61 = arith.cmpf oeq, %46, %60 : vector<16x128xf32>
    %c128_i32_24 = arith.constant 128 : i32
    %62 = vector.broadcast %c128_i32_24 : i32 to vector<16x128xi32>
    %63 = arith.select %61, %50, %62 : vector<16x128xi1>, vector<16x128xi32>
    %c0_25 = arith.constant 0 : index
    %c1 = arith.constant 1 : index
    %64 = vector.load %arg8[%c0_25, %c1] : memref<16x128xi32, #tpu.memory_space<vmem>>, vector<16x1xi32>
    %cst_26 = arith.constant dense<2147483647> : vector<16xi32>
    %65 = vector.multi_reduction <minsi>, %63, %cst_26 [1] : vector<16x128xi32> to vector<16xi32>
    %66 = vector.shape_cast %65 : vector<16xi32> to vector<16x1xi32>
    %67 = arith.minsi %64, %66 : vector<16x1xi32>
    %c0_27 = arith.constant 0 : index
    %c1_28 = arith.constant 1 : index
    %68 = vector.load %arg8[%c0_27, %c1_28] : memref<16x128xi32, #tpu.memory_space<vmem>>, vector<16x1xi32>
    tpu.vector_store %arg8[%c0_27, %c1_28], %67 {strides = array<i32>} : memref<16x128xi32, #tpu.memory_space<vmem>>, vector<16x1xi32>,
    %cst_29 = arith.constant 2.000000e+00 : f32
    %69 = vector.broadcast %cst_29 : f32 to vector<16x128xf32>
    %70 = arith.cmpf oeq, %46, %69 : vector<16x128xf32>
    %c128_i32_30 = arith.constant 128 : i32
    %71 = vector.broadcast %c128_i32_30 : i32 to vector<16x128xi32>
    %72 = arith.select %70, %50, %71 : vector<16x128xi1>, vector<16x128xi32>
    %c0_31 = arith.constant 0 : index
    %c2 = arith.constant 2 : index
    %73 = vector.load %arg8[%c0_31, %c2] : memref<16x128xi32, #tpu.memory_space<vmem>>, vector<16x1xi32>
    %cst_32 = arith.constant dense<2147483647> : vector<16xi32>
    %74 = vector.multi_reduction <minsi>, %72, %cst_32 [1] : vector<16x128xi32> to vector<16xi32>
    %75 = vector.shape_cast %74 : vector<16xi32> to vector<16x1xi32>
    %76 = arith.minsi %73, %75 : vector<16x1xi32>
    %c0_33 = arith.constant 0 : index
    %c2_34 = arith.constant 2 : index
    %77 = vector.load %arg8[%c0_33, %c2_34] : memref<16x128xi32, #tpu.memory_space<vmem>>, vector<16x1xi32>
    tpu.vector_store %arg8[%c0_33, %c2_34], %76 {strides = array<i32>} : memref<16x128xi32, #tpu.memory_space<vmem>>, vector<16x1xi32>,
    %cst_35 = arith.constant 3.000000e+00 : f32
    %78 = vector.broadcast %cst_35 : f32 to vector<16x128xf32>
    %79 = arith.cmpf oeq, %46, %78 : vector<16x128xf32>
    %c128_i32_36 = arith.constant 128 : i32
    %80 = vector.broadcast %c128_i32_36 : i32 to vector<16x128xi32>
    %81 = arith.select %79, %50, %80 : vector<16x128xi1>, vector<16x128xi32>
    %c0_37 = arith.constant 0 : index
    %c3 = arith.constant 3 : index
    %82 = vector.load %arg8[%c0_37, %c3] : memref<16x128xi32, #tpu.memory_space<vmem>>, vector<16x1xi32>
    %cst_38 = arith.constant dense<2147483647> : vector<16xi32>
    %83 = vector.multi_reduction <minsi>, %81, %cst_38 [1] : vector<16x128xi32> to vector<16xi32>
    %84 = vector.shape_cast %83 : vector<16xi32> to vector<16x1xi32>
    %85 = arith.minsi %82, %84 : vector<16x1xi32>
    %c0_39 = arith.constant 0 : index
    %c3_40 = arith.constant 3 : index
    %86 = vector.load %arg8[%c0_39, %c3_40] : memref<16x128xi32, #tpu.memory_space<vmem>>, vector<16x1xi32>
    tpu.vector_store %arg8[%c0_39, %c3_40], %85 {strides = array<i32>} : memref<16x128xi32, #tpu.memory_space<vmem>>, vector<16x1xi32>,
    %cst_41 = arith.constant 4.000000e+00 : f32
    %87 = vector.broadcast %cst_41 : f32 to vector<16x128xf32>
    %88 = arith.cmpf oeq, %46, %87 : vector<16x128xf32>
    %c128_i32_42 = arith.constant 128 : i32
    %89 = vector.broadcast %c128_i32_42 : i32 to vector<16x128xi32>
    %90 = arith.select %88, %50, %89 : vector<16x128xi1>, vector<16x128xi32>
    %c0_43 = arith.constant 0 : index
    %c4 = arith.constant 4 : index
    %91 = vector.load %arg8[%c0_43, %c4] : memref<16x128xi32, #tpu.memory_space<vmem>>, vector<16x1xi32>
    %cst_44 = arith.constant dense<2147483647> : vector<16xi32>
    %92 = vector.multi_reduction <minsi>, %90, %cst_44 [1] : vector<16x128xi32> to vector<16xi32>
    %93 = vector.shape_cast %92 : vector<16xi32> to vector<16x1xi32>
    %94 = arith.minsi %91, %93 : vector<16x1xi32>
    %c0_45 = arith.constant 0 : index
    %c4_46 = arith.constant 4 : index
    %95 = vector.load %arg8[%c0_45, %c4_46] : memref<16x128xi32, #tpu.memory_space<vmem>>, vector<16x1xi32>
    tpu.vector_store %arg8[%c0_45, %c4_46], %94 {strides = array<i32>} : memref<16x128xi32, #tpu.memory_space<vmem>>, vector<16x1xi32>,
    %cst_47 = arith.constant 5.000000e+00 : f32
    %96 = vector.broadcast %cst_47 : f32 to vector<16x128xf32>
    %97 = arith.cmpf oeq, %46, %96 : vector<16x128xf32>
    %c128_i32_48 = arith.constant 128 : i32
    %98 = vector.broadcast %c128_i32_48 : i32 to vector<16x128xi32>
    %99 = arith.select %97, %50, %98 : vector<16x128xi1>, vector<16x128xi32>
    %c0_49 = arith.constant 0 : index
    %c5 = arith.constant 5 : index
    %100 = vector.load %arg8[%c0_49, %c5] : memref<16x128xi32, #tpu.memory_space<vmem>>, vector<16x1xi32>
    %cst_50 = arith.constant dense<2147483647> : vector<16xi32>
    %101 = vector.multi_reduction <minsi>, %99, %cst_50 [1] : vector<16x128xi32> to vector<16xi32>
    %102 = vector.shape_cast %101 : vector<16xi32> to vector<16x1xi32>
    %103 = arith.minsi %100, %102 : vector<16x1xi32>
    %c0_51 = arith.constant 0 : index
    %c5_52 = arith.constant 5 : index
    %104 = vector.load %arg8[%c0_51, %c5_52] : memref<16x128xi32, #tpu.memory_space<vmem>>, vector<16x1xi32>
    tpu.vector_store %arg8[%c0_51, %c5_52], %103 {strides = array<i32>} : memref<16x128xi32, #tpu.memory_space<vmem>>, vector<16x1xi32>,
    %cst_53 = arith.constant 6.000000e+00 : f32
    %105 = vector.broadcast %cst_53 : f32 to vector<16x128xf32>
    %106 = arith.cmpf oeq, %46, %105 : vector<16x128xf32>
    %c128_i32_54 = arith.constant 128 : i32
    %107 = vector.broadcast %c128_i32_54 : i32 to vector<16x128xi32>
    %108 = arith.select %106, %50, %107 : vector<16x128xi1>, vector<16x128xi32>
    %c0_55 = arith.constant 0 : index
    %c6 = arith.constant 6 : index
    %109 = vector.load %arg8[%c0_55, %c6] : memref<16x128xi32, #tpu.memory_space<vmem>>, vector<16x1xi32>
    %cst_56 = arith.constant dense<2147483647> : vector<16xi32>
    %110 = vector.multi_reduction <minsi>, %108, %cst_56 [1] : vector<16x128xi32> to vector<16xi32>
    %111 = vector.shape_cast %110 : vector<16xi32> to vector<16x1xi32>
    %112 = arith.minsi %109, %111 : vector<16x1xi32>
    %c0_57 = arith.constant 0 : index
    %c6_58 = arith.constant 6 : index
    %113 = vector.load %arg8[%c0_57, %c6_58] : memref<16x128xi32, #tpu.memory_space<vmem>>, vector<16x1xi32>
    tpu.vector_store %arg8[%c0_57, %c6_58], %112 {strides = array<i32>} : memref<16x128xi32, #tpu.memory_space<vmem>>, vector<16x1xi32>,
    %cst_59 = arith.constant 7.000000e+00 : f32
    %114 = vector.broadcast %cst_59 : f32 to vector<16x128xf32>
    %115 = arith.cmpf oeq, %46, %114 : vector<16x128xf32>
    %c128_i32_60 = arith.constant 128 : i32
    %116 = vector.broadcast %c128_i32_60 : i32 to vector<16x128xi32>
    %117 = arith.select %115, %50, %116 : vector<16x128xi1>, vector<16x128xi32>
    %c0_61 = arith.constant 0 : index
    %c7 = arith.constant 7 : index
    %118 = vector.load %arg8[%c0_61, %c7] : memref<16x128xi32, #tpu.memory_space<vmem>>, vector<16x1xi32>
    %cst_62 = arith.constant dense<2147483647> : vector<16xi32>
    %119 = vector.multi_reduction <minsi>, %117, %cst_62 [1] : vector<16x128xi32> to vector<16xi32>
    %120 = vector.shape_cast %119 : vector<16xi32> to vector<16x1xi32>
    %121 = arith.minsi %118, %120 : vector<16x1xi32>
    %c0_63 = arith.constant 0 : index
    %c7_64 = arith.constant 7 : index
    %122 = vector.load %arg8[%c0_63, %c7_64] : memref<16x128xi32, #tpu.memory_space<vmem>>, vector<16x1xi32>
    tpu.vector_store %arg8[%c0_63, %c7_64], %121 {strides = array<i32>} : memref<16x128xi32, #tpu.memory_space<vmem>>, vector<16x1xi32>,
    %cst_65 = arith.constant 8.000000e+00 : f32
    %123 = vector.broadcast %cst_65 : f32 to vector<16x128xf32>
    %124 = arith.cmpf oeq, %46, %123 : vector<16x128xf32>
    %c128_i32_66 = arith.constant 128 : i32
    %125 = vector.broadcast %c128_i32_66 : i32 to vector<16x128xi32>
    %126 = arith.select %124, %50, %125 : vector<16x128xi1>, vector<16x128xi32>
    %c0_67 = arith.constant 0 : index
    %c8 = arith.constant 8 : index
    %127 = vector.load %arg8[%c0_67, %c8] : memref<16x128xi32, #tpu.memory_space<vmem>>, vector<16x1xi32>
    %cst_68 = arith.constant dense<2147483647> : vector<16xi32>
    %128 = vector.multi_reduction <minsi>, %126, %cst_68 [1] : vector<16x128xi32> to vector<16xi32>
    %129 = vector.shape_cast %128 : vector<16xi32> to vector<16x1xi32>
    %130 = arith.minsi %127, %129 : vector<16x1xi32>
    %c0_69 = arith.constant 0 : index
    %c8_70 = arith.constant 8 : index
    %131 = vector.load %arg8[%c0_69, %c8_70] : memref<16x128xi32, #tpu.memory_space<vmem>>, vector<16x1xi32>
    tpu.vector_store %arg8[%c0_69, %c8_70], %130 {strides = array<i32>} : memref<16x128xi32, #tpu.memory_space<vmem>>, vector<16x1xi32>,
    %cst_71 = arith.constant 9.000000e+00 : f32
    %132 = vector.broadcast %cst_71 : f32 to vector<16x128xf32>
    %133 = arith.cmpf oeq, %46, %132 : vector<16x128xf32>
    %c128_i32_72 = arith.constant 128 : i32
    %134 = vector.broadcast %c128_i32_72 : i32 to vector<16x128xi32>
    %135 = arith.select %133, %50, %134 : vector<16x128xi1>, vector<16x128xi32>
    %c0_73 = arith.constant 0 : index
    %c9 = arith.constant 9 : index
    %136 = vector.load %arg8[%c0_73, %c9] : memref<16x128xi32, #tpu.memory_space<vmem>>, vector<16x1xi32>
    %cst_74 = arith.constant dense<2147483647> : vector<16xi32>
    %137 = vector.multi_reduction <minsi>, %135, %cst_74 [1] : vector<16x128xi32> to vector<16xi32>
    %138 = vector.shape_cast %137 : vector<16xi32> to vector<16x1xi32>
    %139 = arith.minsi %136, %138 : vector<16x1xi32>
    %c0_75 = arith.constant 0 : index
    %c9_76 = arith.constant 9 : index
    %140 = vector.load %arg8[%c0_75, %c9_76] : memref<16x128xi32, #tpu.memory_space<vmem>>, vector<16x1xi32>
    tpu.vector_store %arg8[%c0_75, %c9_76], %139 {strides = array<i32>} : memref<16x128xi32, #tpu.memory_space<vmem>>, vector<16x1xi32>,
    %cst_77 = arith.constant 1.000000e+01 : f32
    %141 = vector.broadcast %cst_77 : f32 to vector<16x128xf32>
    %142 = arith.cmpf oeq, %46, %141 : vector<16x128xf32>
    %c128_i32_78 = arith.constant 128 : i32
    %143 = vector.broadcast %c128_i32_78 : i32 to vector<16x128xi32>
    %144 = arith.select %142, %50, %143 : vector<16x128xi1>, vector<16x128xi32>
    %c0_79 = arith.constant 0 : index
    %c10 = arith.constant 10 : index
    %145 = vector.load %arg8[%c0_79, %c10] : memref<16x128xi32, #tpu.memory_space<vmem>>, vector<16x1xi32>
    %cst_80 = arith.constant dense<2147483647> : vector<16xi32>
    %146 = vector.multi_reduction <minsi>, %144, %cst_80 [1] : vector<16x128xi32> to vector<16xi32>
    %147 = vector.shape_cast %146 : vector<16xi32> to vector<16x1xi32>
    %148 = arith.minsi %145, %147 : vector<16x1xi32>
    %c0_81 = arith.constant 0 : index
    %c10_82 = arith.constant 10 : index
    %149 = vector.load %arg8[%c0_81, %c10_82] : memref<16x128xi32, #tpu.memory_space<vmem>>, vector<16x1xi32>
    tpu.vector_store %arg8[%c0_81, %c10_82], %148 {strides = array<i32>} : memref<16x128xi32, #tpu.memory_space<vmem>>, vector<16x1xi32>,
    %cst_83 = arith.constant 1.100000e+01 : f32
    %150 = vector.broadcast %cst_83 : f32 to vector<16x128xf32>
    %151 = arith.cmpf oeq, %46, %150 : vector<16x128xf32>
    %c128_i32_84 = arith.constant 128 : i32
    %152 = vector.broadcast %c128_i32_84 : i32 to vector<16x128xi32>
    %153 = arith.select %151, %50, %152 : vector<16x128xi1>, vector<16x128xi32>
    %c0_85 = arith.constant 0 : index
    %c11 = arith.constant 11 : index
    %154 = vector.load %arg8[%c0_85, %c11] : memref<16x128xi32, #tpu.memory_space<vmem>>, vector<16x1xi32>
    %cst_86 = arith.constant dense<2147483647> : vector<16xi32>
    %155 = vector.multi_reduction <minsi>, %153, %cst_86 [1] : vector<16x128xi32> to vector<16xi32>
    %156 = vector.shape_cast %155 : vector<16xi32> to vector<16x1xi32>
    %157 = arith.minsi %154, %156 : vector<16x1xi32>
    %c0_87 = arith.constant 0 : index
    %c11_88 = arith.constant 11 : index
    %158 = vector.load %arg8[%c0_87, %c11_88] : memref<16x128xi32, #tpu.memory_space<vmem>>, vector<16x1xi32>
    tpu.vector_store %arg8[%c0_87, %c11_88], %157 {strides = array<i32>} : memref<16x128xi32, #tpu.memory_space<vmem>>, vector<16x1xi32>,
    %cst_89 = arith.constant 1.200000e+01 : f32
    %159 = vector.broadcast %cst_89 : f32 to vector<16x128xf32>
    %160 = arith.cmpf oeq, %46, %159 : vector<16x128xf32>
    %c128_i32_90 = arith.constant 128 : i32
    %161 = vector.broadcast %c128_i32_90 : i32 to vector<16x128xi32>
    %162 = arith.select %160, %50, %161 : vector<16x128xi1>, vector<16x128xi32>
    %c0_91 = arith.constant 0 : index
    %c12 = arith.constant 12 : index
    %163 = vector.load %arg8[%c0_91, %c12] : memref<16x128xi32, #tpu.memory_space<vmem>>, vector<16x1xi32>
    %cst_92 = arith.constant dense<2147483647> : vector<16xi32>
    %164 = vector.multi_reduction <minsi>, %162, %cst_92 [1] : vector<16x128xi32> to vector<16xi32>
    %165 = vector.shape_cast %164 : vector<16xi32> to vector<16x1xi32>
    %166 = arith.minsi %163, %165 : vector<16x1xi32>
    %c0_93 = arith.constant 0 : index
    %c12_94 = arith.constant 12 : index
    %167 = vector.load %arg8[%c0_93, %c12_94] : memref<16x128xi32, #tpu.memory_space<vmem>>, vector<16x1xi32>
    tpu.vector_store %arg8[%c0_93, %c12_94], %166 {strides = array<i32>} : memref<16x128xi32, #tpu.memory_space<vmem>>, vector<16x1xi32>,
    %cst_95 = arith.constant 1.300000e+01 : f32
    %168 = vector.broadcast %cst_95 : f32 to vector<16x128xf32>
    %169 = arith.cmpf oeq, %46, %168 : vector<16x128xf32>
    %c128_i32_96 = arith.constant 128 : i32
    %170 = vector.broadcast %c128_i32_96 : i32 to vector<16x128xi32>
    %171 = arith.select %169, %50, %170 : vector<16x128xi1>, vector<16x128xi32>
    %c0_97 = arith.constant 0 : index
    %c13 = arith.constant 13 : index
    %172 = vector.load %arg8[%c0_97, %c13] : memref<16x128xi32, #tpu.memory_space<vmem>>, vector<16x1xi32>
    %cst_98 = arith.constant dense<2147483647> : vector<16xi32>
    %173 = vector.multi_reduction <minsi>, %171, %cst_98 [1] : vector<16x128xi32> to vector<16xi32>
    %174 = vector.shape_cast %173 : vector<16xi32> to vector<16x1xi32>
    %175 = arith.minsi %172, %174 : vector<16x1xi32>
    %c0_99 = arith.constant 0 : index
    %c13_100 = arith.constant 13 : index
    %176 = vector.load %arg8[%c0_99, %c13_100] : memref<16x128xi32, #tpu.memory_space<vmem>>, vector<16x1xi32>
    tpu.vector_store %arg8[%c0_99, %c13_100], %175 {strides = array<i32>} : memref<16x128xi32, #tpu.memory_space<vmem>>, vector<16x1xi32>,
    %cst_101 = arith.constant 1.400000e+01 : f32
    %177 = vector.broadcast %cst_101 : f32 to vector<16x128xf32>
    %178 = arith.cmpf oeq, %46, %177 : vector<16x128xf32>
    %c128_i32_102 = arith.constant 128 : i32
    %179 = vector.broadcast %c128_i32_102 : i32 to vector<16x128xi32>
    %180 = arith.select %178, %50, %179 : vector<16x128xi1>, vector<16x128xi32>
    %c0_103 = arith.constant 0 : index
    %c14 = arith.constant 14 : index
    %181 = vector.load %arg8[%c0_103, %c14] : memref<16x128xi32, #tpu.memory_space<vmem>>, vector<16x1xi32>
    %cst_104 = arith.constant dense<2147483647> : vector<16xi32>
    %182 = vector.multi_reduction <minsi>, %180, %cst_104 [1] : vector<16x128xi32> to vector<16xi32>
    %183 = vector.shape_cast %182 : vector<16xi32> to vector<16x1xi32>
    %184 = arith.minsi %181, %183 : vector<16x1xi32>
    %c0_105 = arith.constant 0 : index
    %c14_106 = arith.constant 14 : index
    %185 = vector.load %arg8[%c0_105, %c14_106] : memref<16x128xi32, #tpu.memory_space<vmem>>, vector<16x1xi32>
    tpu.vector_store %arg8[%c0_105, %c14_106], %184 {strides = array<i32>} : memref<16x128xi32, #tpu.memory_space<vmem>>, vector<16x1xi32>,
    %cst_107 = arith.constant 1.500000e+01 : f32
    %186 = vector.broadcast %cst_107 : f32 to vector<16x128xf32>
    %187 = arith.cmpf oeq, %46, %186 : vector<16x128xf32>
    %c128_i32_108 = arith.constant 128 : i32
    %188 = vector.broadcast %c128_i32_108 : i32 to vector<16x128xi32>
    %189 = arith.select %187, %50, %188 : vector<16x128xi1>, vector<16x128xi32>
    %c0_109 = arith.constant 0 : index
    %c15 = arith.constant 15 : index
    %190 = vector.load %arg8[%c0_109, %c15] : memref<16x128xi32, #tpu.memory_space<vmem>>, vector<16x1xi32>
    %cst_110 = arith.constant dense<2147483647> : vector<16xi32>
    %191 = vector.multi_reduction <minsi>, %189, %cst_110 [1] : vector<16x128xi32> to vector<16xi32>
    %192 = vector.shape_cast %191 : vector<16xi32> to vector<16x1xi32>
    %193 = arith.minsi %190, %192 : vector<16x1xi32>
    %c0_111 = arith.constant 0 : index
    %c15_112 = arith.constant 15 : index
    %194 = vector.load %arg8[%c0_111, %c15_112] : memref<16x128xi32, #tpu.memory_space<vmem>>, vector<16x1xi32>
    tpu.vector_store %arg8[%c0_111, %c15_112], %193 {strides = array<i32>} : memref<16x128xi32, #tpu.memory_space<vmem>>, vector<16x1xi32>,
    %195 = vector.extract_strided_slice %46 {offsets = [0, 127], sizes = [16, 1], strides = [1, 1]} : vector<16x128xf32> to vector<16x1xf32>
    %196 = vector.extract_strided_slice %38 {offsets = [0, 127], sizes = [16, 1], strides = [1, 1]} : vector<16x128xi1> to vector<16x1xi1>
    %197 = arith.extui %196 : vector<16x1xi1> to vector<16x1xi32>
    %198 = arith.sitofp %197 : vector<16x1xi32> to vector<16x1xf32>
    %199 = arith.addf %195, %198 : vector<16x1xf32>
    %c0_113 = arith.constant 0 : index
    %c0_114 = arith.constant 0 : index
    %200 = vector.load %arg7[%c0_113, %c0_114] : memref<16x1xf32, #tpu.memory_space<vmem>>, vector<16x1xf32>
    tpu.vector_store %arg7[%c0_113, %c0_114], %199 {strides = array<i32>} : memref<16x1xf32, #tpu.memory_space<vmem>>, vector<16x1xf32>,
    %c0_i32_115 = arith.constant 0 : i32
    %201 = arith.cmpi eq, %arg2, %c0_i32_115 : i32
    %202 = arith.extui %201 : i1 to i32
    %c0_i32_116 = arith.constant 0 : i32
    %203 = arith.cmpi ne, %202, %c0_i32_116 : i32
    scf.if %203 {
      %c0_117 = arith.constant 0 : index
      %c0_118 = arith.constant 0 : index
      %204 = vector.load %arg8[%c0_117, %c0_118] : memref<16x128xi32, #tpu.memory_space<vmem>>, vector<16x128xi32>
      %205 = vector.extract_strided_slice %204 {offsets = [0, 0], sizes = [16, 1], strides = [1, 1]} : vector<16x128xi32> to vector<16x1xi32>
      %c128_i32_119 = arith.constant 128 : i32
      %206 = vector.broadcast %c128_i32_119 : i32 to vector<16x128xi32>
      %207 = arith.cmpi eq, %204, %206 : vector<16x128xi32>
      %208 = vector.shape_cast %205 : vector<16x1xi32> to vector<16x1xi32>
      %209 = vector.broadcast %208 : vector<16x1xi32> to vector<16x128xi32>
      %210 = arith.select %207, %209, %204 : vector<16x128xi1>, vector<16x128xi32>
      %c0_120 = arith.constant 0 : index
      %c0_121 = arith.constant 0 : index
      %c0_122 = arith.constant 0 : index
      %211 = vector.load %arg6[%c0_120, %c0_121, %c0_122] : memref<1x16x128xi32, #tpu.memory_space<vmem>>, vector<1x16x128xi32>
      %212 = vector.shape_cast %211 : vector<1x16x128xi32> to vector<16x128xi32>
      %213 = vector.shape_cast %210 : vector<16x128xi32> to vector<1x16x128xi32>
      tpu.vector_store %arg6[%c0_120, %c0_121, %c0_122], %213 {strides = array<i32>} : memref<1x16x128xi32, #tpu.memory_space<vmem>>, vector<1x16x128xi32>,
    } else {
    }
    return
  }
  func.func @transform_0(%arg0: i32, %arg1: i32, %arg2: i32) -> (i32, i32, i32) {
    %c0_i32 = arith.constant 0 : i32
    %c0_i32_0 = arith.constant 0 : i32
    return %arg0, %c0_i32, %arg2 : i32, i32, i32
  }
  func.func @transform_1(%arg0: i32, %arg1: i32, %arg2: i32) -> (i32, i32, i32) {
    %c0_i32 = arith.constant 0 : i32
    %c0_i32_0 = arith.constant 0 : i32
    return %arg0, %arg1, %c0_i32 : i32, i32, i32
  }
  func.func @transform_2(%arg0: i32, %arg1: i32, %arg2: i32) -> (i32, i32) {
    %c0_i32 = arith.constant 0 : i32
    %c0_i32_0 = arith.constant 0 : i32
    %c0_i32_1 = arith.constant 0 : i32
    return %c0_i32, %c0_i32_0 : i32, i32
  }
  func.func @transform_3(%arg0: i32, %arg1: i32, %arg2: i32) -> (i32, i32, i32) {
    %c0_i32 = arith.constant 0 : i32
    %c0_i32_0 = arith.constant 0 : i32
    return %arg0, %arg1, %c0_i32 : i32, i32, i32
  }
}

</mosaic_0001>

<llo_original>
// kernel: tpu_custom_call.1
$region0: #{tpu_custom_call.1}
  #allocation0 [shape = 'u32[]', space=smem, size = 0x4, offset = 0x4, fixed_abs, tag = 'smem constant byte address 0x4 - core index']
  #allocation1 [shape = 'u32[144,128]{1,0:T(1,128)}', space=vmem, size = 0x12000, scoped, tag = 'internal scratch']
  #allocation2 [shape = 'f32[16,1]{1,0:T(8,128)}', space=vmem, size = 0x2000, scoped, tag = 'scratch operand']
  #allocation3 [shape = 's32[16,128]{1,0:T(8,128)}', space=vmem, size = 0x2000, scoped, tag = 'scratch operand']
  #allocation4 [shape = 's32[1,128]{1,0:T(1,128)}', space=vmem, size = 0x200, scoped, tag = 'scratch operand']
  %s0 = inlined_call_operand.vmem [shape: f32[2,3,128], index: 0, kind: input, shape index: {}]
  %s1 = inlined_call_operand.vmem [shape: f32[2,16,3], index: 1, kind: input, shape index: {}]
  %s2 = inlined_call_operand.hbm [shape: bf16[128,128], index: 2, kind: input, shape index: {}]
  %s3 = inlined_call_operand.hbm [shape: s32[2,16,128], index: 3, kind: output, shape index: {}]
  %s4 = sld [smem:[#allocation0]]
  $region57: #{tpu_custom_call.1} parent=0
    _
  %s6 = ssub.s32 1, %s4
  %s7 = scalar_select 0, %s6, %s4
  $region1: #{tpu_custom_call.1} parent=0
    #allocation5 [shape = 'u8[32768]{0}', space=vmem, size = 0x8000, scoped, tag = 'input window, operand 2, single buffered']
    #allocation6 [shape = 's32[2]{0}', space=sflag, size = 0x8, scoped, tag = 'scoped memory for tpu_custom_call.1']
    #allocation7 [shape = 's32[2]{0}', space=sflag, size = 0x8, scoped, tag = 'scoped memory for tpu_custom_call.1']
    #allocation8 [shape = 'u8[16384]{0}', space=vmem, size = 0x4000, scoped, tag = 'output window, operand 0']
    %8 = vsyncpa [#allocation6], 0
    %9 = vsyncpa [#allocation7], 0
    %s10 = scalar_lea.sflag [#allocation7], 1
    %11 = vsyncpa %s10, 0
    loop: start=0, step=1, limit=4
    $region2: #{tpu_custom_call.1} parent=1 // loop_pre_header
      _
    $region3: #{tpu_custom_call.1} parent=1 // loop_header
      %s13 = sphi 0, %s17
      %p14 = scmp.ge.s32.totalorder %s13, 4
      %s20 = sphi 0, %s39
      %s21 = sphi 0, %s35
      %s22 = sphi 0, %s31
      %s23 = sphi 0, %s20
      %s24 = sphi 0, %s21
      %s25 = sphi 0, %s22
      %s26 = sphi 0, %s23
      %s27 = sphi 0, %s24
      %s28 = sphi 0, %s25
      %s44 = sphi 0, %s46
      %s47 = sphi 0, %s44
      %s48 = sphi 0, %s47
      %s64 = sphi 0, %s48
      %s72 = sphi 0, %s74
      %s75 = sphi 0, %s72
      %s76 = sphi 0, %s75
      %s92 = sphi 0, %s76
      %s96 = sphi 0, %s96
      %s98 = sphi 0, %s96
      %s99 = sphi 0, %s98
      %s113 = sphi 0, %s99
      %s121 = sphi 0, %s123
      %s124 = sphi 0, %s121
      %s125 = sphi 0, %s124
      %s141 = sphi 0, %s125
    $region4: #{tpu_custom_call.1} parent=1 // loop_header_branch
      %16 = sbr.rel (%p14) target = $region8
    $region5: #{tpu_custom_call.1} parent=1 // loop_body
      %s18 = ssub.s32 %s13, 1
      %s19 = ssub.s32 %s13, 2
      %s29 = sadd.s32 1, %s22
      %p30 = scmp.ge.s32.totalorder %s29, 1
      %s31 = scalar_select %p30, 0, %s29
      %s32 = sadd.s32 1, %s21
      %s33 = scalar_select %p30, %s32, %s21
      %p34 = scmp.ge.s32.totalorder %s33, 1
      %s35 = scalar_select %p34, 0, %s33
      %s36 = sadd.s32 1, %s20
      %s37 = scalar_select %p34, %s36, %s20
      %p38 = scmp.ge.s32.totalorder %s37, 2
      %s39 = scalar_select %p38, 0, %s37
      %s40 = ssub.s32 %s20, %s39
      %s41 = ssub.s32 %s22, %s31
      %s42 = sor.u32 %s40, %s41
      %p43 = scmp.eq.s32.totalorder %s42, 0
      %s45 = sadd.s32 %s44, 1
      %s46 = scalar_select %p43, %s44, %s45
      %p49 = pneg %p43
      %p50 = scmp.eq.s32.totalorder %s13, 1
      %p51 = por %p49, %p50
      %p52 = scmp.ne.s32.totalorder %s44, %s47
      %p53 = scmp.eq.s32.totalorder %s13, 0
      %p54 = por %p52, %p53
      %p55 = scmp.ne.s32.totalorder %s44, %s47
      %p56 = scmp.eq.s32.totalorder %s18, 1
      %p57 = por %p55, %p56
      %p58 = scmp.ne.s32.totalorder %s47, %s48
      %p59 = scmp.eq.s32.totalorder %s18, 0
      %p60 = por %p58, %p59
      %p61 = scmp.ne.s32.totalorder %s47, %s48
      %p62 = scmp.eq.s32.totalorder %s19, 1
      %p63 = por %p61, %p62
      %p65 = scmp.ne.s32.totalorder %s48, %s64
      %p66 = scmp.eq.s32.totalorder %s19, 0
      %p67 = por %p65, %p66
      %s68 = ssub.s32 %s20, %s39
      %s69 = ssub.s32 %s21, %s35
      %s70 = sor.u32 %s68, %s69
      %p71 = scmp.eq.s32.totalorder %s70, 0
      %s73 = sadd.s32 %s72, 1
      %s74 = scalar_select %p71, %s72, %s73
      %p77 = pneg %p71
      %p78 = scmp.eq.s32.totalorder %s13, 1
      %p79 = por %p77, %p78
      %p80 = scmp.ne.s32.totalorder %s72, %s75
      %p81 = scmp.eq.s32.totalorder %s13, 0
      %p82 = por %p80, %p81
      %p83 = scmp.ne.s32.totalorder %s72, %s75
      %p84 = scmp.eq.s32.totalorder %s18, 1
      %p85 = por %p83, %p84
      %p86 = scmp.ne.s32.totalorder %s75, %s76
      %p87 = scmp.eq.s32.totalorder %s18, 0
      %p88 = por %p86, %p87
      %p89 = scmp.ne.s32.totalorder %s75, %s76
      %p90 = scmp.eq.s32.totalorder %s19, 1
      %p91 = por %p89, %p90
      %p93 = scmp.ne.s32.totalorder %s76, %s92
      %p94 = scmp.eq.s32.totalorder %s19, 0
      %p95 = por %p93, %p94
      %s97 = sadd.s32 %s96, 1
      %p100 = scmp.eq.s32.totalorder %s13, 1
      %p101 = scmp.ne.s32.totalorder %s96, %s98
      %p102 = scmp.eq.s32.totalorder %s13, 0
      %p103 = por %p101, %p102
      %p104 = scmp.ne.s32.totalorder %s96, %s98
      %p105 = scmp.eq.s32.totalorder %s18, 1
      %p106 = por %p104, %p105
      %p107 = scmp.ne.s32.totalorder %s98, %s99
      %p108 = scmp.eq.s32.totalorder %s18, 0
      %p109 = por %p107, %p108
      %p110 = scmp.ne.s32.totalorder %s98, %s99
      %p111 = scmp.eq.s32.totalorder %s19, 1
      %p112 = por %p110, %p111
      %p114 = scmp.ne.s32.totalorder %s99, %s113
      %p115 = scmp.eq.s32.totalorder %s19, 0
      %p116 = por %p114, %p115
      %s117 = ssub.s32 %s20, %s39
      %s118 = ssub.s32 %s21, %s35
      %s119 = sor.u32 %s117, %s118
      %p120 = scmp.eq.s32.totalorder %s119, 0
      %s122 = sadd.s32 %s121, 1
      %s123 = scalar_select %p120, %s121, %s122
      %p126 = pneg %p120
      %p127 = scmp.eq.s32.totalorder %s13, 1
      %p128 = por %p126, %p127
      %p129 = scmp.ne.s32.totalorder %s121, %s124
      %p130 = scmp.eq.s32.totalorder %s13, 0
      %p131 = por %p129, %p130
      %p132 = scmp.ne.s32.totalorder %s121, %s124
      %p133 = scmp.eq.s32.totalorder %s18, 1
      %p134 = por %p132, %p133
      %p135 = scmp.ne.s32.totalorder %s124, %s125
      %p136 = scmp.eq.s32.totalorder %s18, 0
      %p137 = por %p135, %p136
      %p138 = scmp.ne.s32.totalorder %s124, %s125
      %p139 = scmp.eq.s32.totalorder %s19, 1
      %p140 = por %p138, %p139
      %p142 = scmp.ne.s32.totalorder %s125, %s141
      %p143 = scmp.eq.s32.totalorder %s19, 0
      %p144 = por %p142, %p143
      %p145 = scmp.le.s32.totalorder 1, %s13
      %p146 = scmp.lt.s32.totalorder %s13, 3
      %p147 = pnand %p145, %p146
      %p148 = pneg %p147
      // Predicated region
      $region9: #{tpu_custom_call.1} parent=5 // pred_check
        _
      $region10: #{tpu_custom_call.1} parent=5 // pred_check_branch
        %150 = sbr.rel (%p147) target = $region12
      $region11: #{tpu_custom_call.1} parent=5 // pred_region
        %s151 = ssub.s32 %s13, 1
        // Predicated region
        $region13: #{tpu_custom_call.1} parent=11 // pred_check
          %p152 = pneg %p109
        $region14: #{tpu_custom_call.1} parent=11 // pred_check_branch
          %154 = sbr.rel (%p152) target = $region16
        $region15: #{tpu_custom_call.1} parent=11 // pred_region
          %s156 = ssub.s32 1024, 1024
          %157 = vsyncadd [#allocation6], %s156
          %s158 = sshll.u32 [#allocation5], 4
          %s159 = int_to_ptr.vmem [resolvable:$true] %s158
          %164 = dma.hbm_to_vmem [thread:$0]  %s2, 1024, %s159, [#allocation6], 64, 64, 4
        $region16: #{tpu_custom_call.1} parent=11 // pred_fallthru
          _
      $region12: #{tpu_custom_call.1} parent=5 // pred_fallthru
        _
      %p165 = scmp.lt.s32.totalorder %s13, 2
      // Predicated region
      $region17: #{tpu_custom_call.1} parent=5 // pred_check
        %p166 = pneg %p165
      $region18: #{tpu_custom_call.1} parent=5 // pred_check_branch
        %168 = sbr.rel (%p166) target = $region20
      $region19: #{tpu_custom_call.1} parent=5 // pred_region
        // Predicated region
        $region21: #{tpu_custom_call.1} parent=19 // pred_check
          %p169 = pneg %p54
        $region22: #{tpu_custom_call.1} parent=19 // pred_check_branch
          %171 = sbr.rel (%p169) target = $region24
        $region23: #{tpu_custom_call.1} parent=19 // pred_region
          %p172 = scmp.lt.s32.totalorder %s20, 1
          %s173 = scalar_select %p172, %s20, 1
          %p174 = scmp.lt.s32.totalorder %s22, 0
          %s175 = scalar_select %p174, %s22, 0
          %s176 = sadd.s32 %s175, %s173
          %s177 = smul.addr %s176, 4
          %s178 = scalar_lea.vmem %s0, %s177
        $region24: #{tpu_custom_call.1} parent=19 // pred_fallthru
          _
        // Predicated region
        $region25: #{tpu_custom_call.1} parent=19 // pred_check
          %p179 = pneg %p82
        $region26: #{tpu_custom_call.1} parent=19 // pred_check_branch
          %181 = sbr.rel (%p179) target = $region28
        $region27: #{tpu_custom_call.1} parent=19 // pred_region
          %s182 = smul.u32 2, %s21
          %p183 = scmp.lt.s32.totalorder %s20, 1
          %s184 = scalar_select %p183, %s20, 1
          %p185 = scmp.lt.s32.totalorder %s182, 1
          %s186 = scalar_select %p185, %s182, 1
          %s187 = smul.addr %s184, 2
          %s188 = sadd.s32 %s186, %s187
          %s189 = smul.addr %s188, 8
          %s190 = scalar_lea.vmem %s1, %s189
          %s191 = smul.u32 2, %s21
        $region28: #{tpu_custom_call.1} parent=19 // pred_fallthru
          _
      $region20: #{tpu_custom_call.1} parent=5 // pred_fallthru
        _
      %p192 = scmp.le.s32.totalorder 1, %s13
      %p193 = scmp.lt.s32.totalorder %s13, 3
      %p194 = pnand %p192, %p193
      %p195 = pneg %p194
      // Predicated region
      $region29: #{tpu_custom_call.1} parent=5 // pred_check
        _
      $region30: #{tpu_custom_call.1} parent=5 // pred_check_branch
        %197 = sbr.rel (%p194) target = $region32
      $region31: #{tpu_custom_call.1} parent=5 // pred_region
        %s198 = ssub.s32 %s13, 1
        // Predicated region
        $region33: #{tpu_custom_call.1} parent=31 // pred_check
          %p199 = pneg %p109
        $region34: #{tpu_custom_call.1} parent=31 // pred_check_branch
          %201 = sbr.rel (%p199) target = $region36
        $region35: #{tpu_custom_call.1} parent=31 // pred_region
          %202 = dma.done [#allocation6], 1024
        $region36: #{tpu_custom_call.1} parent=31 // pred_fallthru
          _
        %p203 = scmp.lt.s32.totalorder %s23, 1
        %s204 = scalar_select %p203, %s23, 1
        %p205 = scmp.lt.s32.totalorder %s25, 0
        %s206 = scalar_select %p205, %s25, 0
        %s207 = sadd.s32 %s206, %s204
        %s208 = smul.addr %s207, 4
        %s209 = scalar_lea.vmem %s0, %s208
        %p210 = pneg %p60
        %p211 = pneg %p57
        %s212 = smul.u32 2, %s24
        %p213 = scmp.lt.s32.totalorder %s23, 1
        %s214 = scalar_select %p213, %s23, 1
        %p215 = scmp.lt.s32.totalorder %s212, 1
        %s216 = scalar_select %p215, %s212, 1
        %s217 = smul.addr %s214, 2
        %s218 = sadd.s32 %s216, %s217
        %s219 = smul.addr %s218, 8
        %s220 = scalar_lea.vmem %s1, %s219
        %p221 = pneg %p88
        %p222 = pneg %p85
        %p223 = pneg %p109
        %p224 = pneg %p106
        %p225 = pneg %p137
        %p226 = pneg %p134
        %s227 = sand.u32 %s124, 1
        %s228 = scalar_lea.sflag [#allocation7], %s227
        %s229 = sand.u32 %s124, 1
        %s230 = smul.addr %s229, 16
        %s231 = scalar_lea.vmem [#allocation8], %s230
        %p232 = scmp.lt.s32.totalorder %s23, 1
        %s233 = scalar_select %p232, %s23, 1
        %p234 = scmp.lt.s32.totalorder %s25, 0
        %s235 = scalar_select %p234, %s25, 0
        %s236 = sadd.s32 %s235, %s233
        %s237 = smul.addr %s236, 4
        %s238 = scalar_lea.vmem %s0, %s237
        %s239 = smul.u32 2, %s24
        %p240 = scmp.lt.s32.totalorder %s23, 1
        %s241 = scalar_select %p240, %s23, 1
        %p242 = scmp.lt.s32.totalorder %s239, 1
        %s243 = scalar_select %p242, %s239, 1
        %s244 = smul.addr %s241, 2
        %s245 = sadd.s32 %s243, %s244
        %s246 = smul.addr %s245, 8
        %s247 = scalar_lea.vmem %s1, %s246
        %s248 = smul.u32 2, %s24
        %s249 = smul.u32 2, %s24
        %p251 = scmp.eq.s32.totalorder %s25, 0
        // Predicated region
        $region37: #{tpu_custom_call.1} parent=31 // pred_check
          %p252 = pneg %p251
        $region38: #{tpu_custom_call.1} parent=31 // pred_check_branch
          %254 = sbr.rel (%p252) target = $region40
        $region39: #{tpu_custom_call.1} parent=31 // pred_region
          %vm255 = vcmask 7168
          %256 = vst.msk [vmem:[#allocation2] sm:$0xff] %vm255, 0.0
          %257 = vst.msk [vmem:[#allocation2 + $0x8] sm:$0xff] %vm255, 0.0
          %258 = vst [vmem:[#allocation3] sm:$0xff] 128
          %259 = vst [vmem:[#allocation3 + $0x8] sm:$0xff] 128
          %v260 = vlaneseq
          %v261 = vand.u32 %v260, 127
          %262 = vst [vmem:[#allocation4] sm:$0x1] %v261
        $region40: #{tpu_custom_call.1} parent=31 // pred_fallthru
          _
        %v263 = vld [vmem:[%s247] sm:$0xff]
        %v264 = vld [vmem:[%s247 + $0x8] sm:$0xff]
        %v265 = vld [vmem:[%s238] sm:$0x7]
        %267 = vset.pattern.permute.xlu0 0
        %268 = vperm.xlu0 %267, %v263
        %v269 = vpop.permute.xlu0 %268
        %272 = vset.pattern.permute.xlu0 0
        %273 = vperm.xlu0 %272, %v264
        %v274 = vpop.permute.xlu0 %273
        %v276 = vlaneseq
        %v277 = vshrl.u32 %v276, 7
        %v278 = vsub.s32 0, %v277
        %v279 = vrot.slane %v265, %v278
        %v280 = vsub.f32 %v269, %v279
        %v281 = vsub.f32 %v274, %v279
        %v282 = vmul.f32 %v280, %v280
        %v283 = vmul.f32 %v281, %v281
        %v284 = vadd.f32 %v282, 0.0
        %v285 = vadd.f32 %v283, 0.0
        %286 = vset.pattern.permute.xlu0 1
        %287 = vperm.xlu0 %286, %v263
        %v288 = vpop.permute.xlu0 %287
        %290 = vset.pattern.permute.xlu0 1
        %291 = vperm.xlu0 %290, %v264
        %v292 = vpop.permute.xlu0 %291
        %v294 = vlaneseq
        %v295 = vshrl.u32 %v294, 7
        %v296 = vsub.s32 1, %v295
        %v297 = vrot.slane %v265, %v296
        %v298 = vsub.f32 %v288, %v297
        %v299 = vsub.f32 %v292, %v297
        %v300 = vmul.f32 %v298, %v298
        %v301 = vmul.f32 %v299, %v299
        %v302 = vadd.f32 %v284, %v300
        %v303 = vadd.f32 %v285, %v301
        %304 = vset.pattern.permute.xlu0 2
        %305 = vperm.xlu0 %304, %v263
        %v306 = vpop.permute.xlu0 %305
        %308 = vset.pattern.permute.xlu0 2
        %309 = vperm.xlu0 %308, %v264
        %v310 = vpop.permute.xlu0 %309
        %v312 = vlaneseq
        %v313 = vshrl.u32 %v312, 7
        %v314 = vsub.s32 2, %v313
        %v315 = vrot.slane %v265, %v314
        %v316 = vsub.f32 %v306, %v315
        %v317 = vsub.f32 %v310, %v315
        %v318 = vmul.f32 %v316, %v316
        %v319 = vmul.f32 %v317, %v317
        %v320 = vadd.f32 %v302, %v318
        %v321 = vadd.f32 %v303, %v319
        %v322 = vld [vmem:[#allocation4] sm:$0x1]
        %s323 = smul.u32 %s25, 128
        %v324 = vstv %s323
        %v325 = vadd.s32 %v322, %v324
        %vm326 = vcmp.le.f32.partialorder %v320, 0.09
        %vm327 = vcmp.le.f32.partialorder %v321, 0.09
        %vm328 = vcmp.lt.s32.totalorder %v325, 128
        %v329 = vsel %vm328, 1, 0
        %v330 = vlaneseq
        %v331 = vshrl.u32 %v330, 7
        %v332 = vsub.s32 0, %v331
        %v333 = vrot.slane %v329, %v332
        %vm334 = vcmp.eq.s32.totalorder %v333, 1
        %vm335 = vmand %vm326, %vm334
        %vm336 = vmand %vm327, %vm334
        %v337 = vsel %vm335, 1, 0
        %v338 = vsel %vm336, 1, 0
        %v339 = vcvt.s32.f32 %v337
        %v340 = vcvt.s32.f32 %v338
        %v341 = vpack.c.bf16 %v340, %v339
        %v342 = vld [vmem:[#allocation5] sm:$0xf]
        %v343 = vld [vmem:[#allocation5 + $0x4] sm:$0xf]
        %v344 = vld [vmem:[#allocation5 + $0x8] sm:$0xf]
        %v345 = vld [vmem:[#allocation5 + $0xc] sm:$0xf]
        %v346 = vld [vmem:[#allocation5 + $0x10] sm:$0xf]
        %v347 = vld [vmem:[#allocation5 + $0x14] sm:$0xf]
        %v348 = vld [vmem:[#allocation5 + $0x18] sm:$0xf]
        %v349 = vld [vmem:[#allocation5 + $0x1c] sm:$0xf]
        %v350 = vld [vmem:[#allocation5 + $0x20] sm:$0xf]
        %v351 = vld [vmem:[#allocation5 + $0x24] sm:$0xf]
        %v352 = vld [vmem:[#allocation5 + $0x28] sm:$0xf]
        %v353 = vld [vmem:[#allocation5 + $0x2c] sm:$0xf]
        %v354 = vld [vmem:[#allocation5 + $0x30] sm:$0xf]
        %v355 = vld [vmem:[#allocation5 + $0x34] sm:$0xf]
        %v356 = vld [vmem:[#allocation5 + $0x38] sm:$0xf]
        %v357 = vld [vmem:[#allocation5 + $0x3c] sm:$0xf]
        %v374 = vunpack.c.l.b16 %v342
        %v375 = vunpack.c.l.b16 %v343
        %v376 = vunpack.c.l.b16 %v344
        %v377 = vunpack.c.l.b16 %v345
        %v378 = vunpack.c.l.b16 %v346
        %v379 = vunpack.c.l.b16 %v347
        %v380 = vunpack.c.l.b16 %v348
        %v381 = vunpack.c.l.b16 %v349
        %v382 = vunpack.c.l.b16 %v350
        %v383 = vunpack.c.l.b16 %v351
        %v384 = vunpack.c.l.b16 %v352
        %v385 = vunpack.c.l.b16 %v353
        %v386 = vunpack.c.l.b16 %v354
        %v387 = vunpack.c.l.b16 %v355
        %v388 = vunpack.c.l.b16 %v356
        %v389 = vunpack.c.l.b16 %v357
        %v390 = vpack.c.b16 %v375, %v374
        %v391 = vpack.c.b16 %v377, %v376
        %v392 = vpack.c.b16 %v379, %v378
        %v393 = vpack.c.b16 %v381, %v380
        %v394 = vpack.c.b16 %v383, %v382
        %v395 = vpack.c.b16 %v385, %v384
        %v396 = vpack.c.b16 %v387, %v386
        %v397 = vpack.c.b16 %v389, %v388
        %406 = vmatprep.subr.bf16.mxu0 0
        %407 = vmatpush1.bf16.msra.mxu0 %v390
        %408 = vmatprep.subr.bf16.mxu0 0
        %409 = vmatpush1.bf16.msra.mxu0 %v391
        %410 = vmatprep.subr.bf16.mxu0 0
        %411 = vmatpush1.bf16.msra.mxu0 %v392
        %412 = vmatprep.subr.bf16.mxu0 0
        %413 = vmatpush1.bf16.msra.mxu0 %v393
        %414 = vmatprep.subr.bf16.mxu0 0
        %415 = vmatpush1.bf16.msra.mxu0 %v394
        %416 = vmatprep.subr.bf16.mxu0 0
        %417 = vmatpush1.bf16.msra.mxu0 %v395
        %418 = vmatprep.subr.bf16.mxu0 0
        %419 = vmatpush1.bf16.msra.mxu0 %v396
        %420 = vmatprep.subr.bf16.mxu0 0
        %421 = vmatpush1.bf16.msra.mxu0 %v397
        %422 = vmatprep.subr.bf16.mxu0 0
        %423 = vmatpush1.bf16.msra.mxu0 0
        %424 = vmatprep.subr.bf16.mxu0 0
        %425 = vmatpush1.bf16.msra.mxu0 0
        %426 = vmatprep.subr.bf16.mxu0 0
        %427 = vmatpush1.bf16.msra.mxu0 0
        %428 = vmatprep.subr.bf16.mxu0 0
        %429 = vmatpush1.bf16.msra.mxu0 0
        %430 = vmatprep.subr.bf16.mxu0 0
        %431 = vmatpush1.bf16.msra.mxu0 0
        %432 = vmatprep.subr.bf16.mxu0 0
        %433 = vmatpush1.bf16.msra.mxu0 0
        %434 = vmatprep.subr.bf16.mxu0 0
        %435 = vmatpush1.bf16.msra.mxu0 0
        %436 = vmatprep.subr.bf16.mxu0 0
        %437 = vmatpush1.bf16.msra.mxu0 0
        %438 = vmatprep.mubr.bf16.mxu0 0
        %439 = vmatmul.mubr.bf16.gmra.mrb[0].mxu0 %v341
        %v440 = vpop.f32.mrb[0].mxu0
        %v441 = vadd.f32 0.0, %v440
        %v442 = vpop.f32.mrb[0].mxu0
        %v443 = vpop.f32.mrb[0].mxu0
        %v444 = vadd.f32 0.0, %v443
        %v445 = vpop.f32.mrb[0].mxu0
        %446 = vdwg.mxu0
        %v447 = vld [vmem:[#allocation2] sm:$0xff]
        %v448 = vld [vmem:[#allocation2 + $0x8] sm:$0xff]
        %450 = vset.pattern.permute.xlu0 0
        %451 = vperm.xlu0 %450, %v447
        %v452 = vpop.permute.xlu0 %451
        %455 = vset.pattern.permute.xlu0 0
        %456 = vperm.xlu0 %455, %v448
        %v457 = vpop.permute.xlu0 %456
        %v459 = vadd.f32 %v452, %v441
        %v460 = vadd.f32 %v457, %v444
        %v461 = vlaneseq
        %v462 = vshrl.u32 %v461, 7
        %v463 = vsub.s32 0, %v462
        %v464 = vrot.slane %v325, %v463
        %v465 = vsel %vm335, %v464, 128
        %v466 = vsel %vm336, %v464, 128
        %vm467 = vcmp.eq.f32.partialorder %v459, 0.0
        %vm468 = vcmp.eq.f32.partialorder %v460, 0.0
        %v469 = vsel %vm467, %v465, 128
        %v470 = vsel %vm468, %v466, 128
        %v471 = vld [vmem:[#allocation3] sm:$0xff]
        %v472 = vld [vmem:[#allocation3 + $0x8] sm:$0xff]
        %v473 = vand.u32 %v469, 65535
        %v474 = vshra.s32 %v469, 16
        %v475 = vcvt.s32.f32 %v473
        %v476 = vcvt.s32.f32 %v474
        %477 = vmin.xlane.f32.xlu0 %v476
        %v478 = vpop.xlane.xlu0 %477
        %vm479 = vcmp.eq.f32.partialorder %v476, %v478
        %v480 = vsel %vm479, %v475, inf
        %481 = vmin.xlane.f32.xlu0 %v480
        %v482 = vpop.xlane.xlu0 %481
        %v483 = vcvt.f32.s32 %v482
        %v484 = vcvt.f32.s32 %v478
        %v485 = vshll.u32 %v484, 16
        %v486 = vadd.s32 %v485, %v483
        %v487 = vand.u32 %v470, 65535
        %v488 = vshra.s32 %v470, 16
        %v489 = vcvt.s32.f32 %v487
        %v490 = vcvt.s32.f32 %v488
        %491 = vmin.xlane.f32.xlu0 %v490
        %v492 = vpop.xlane.xlu0 %491
        %vm493 = vcmp.eq.f32.partialorder %v490, %v492
        %v494 = vsel %vm493, %v489, inf
        %495 = vmin.xlane.f32.xlu0 %v494
        %v496 = vpop.xlane.xlu0 %495
        %v497 = vcvt.f32.s32 %v496
        %v498 = vcvt.f32.s32 %v492
        %v499 = vshll.u32 %v498, 16
        %v500 = vadd.s32 %v499, %v497
        %vm501 = vcmp.lt.s32.totalorder %v471, %v486
        %v502 = vsel %vm501, %v471, %v486
        %vm503 = vcmp.lt.s32.totalorder %v472, %v500
        %v504 = vsel %vm503, %v472, %v500
        %vm505 = vcmask 7168
        %506 = vst.msk [vmem:[#allocation3] sm:$0xff] %vm505, %v502
        %507 = vst.msk [vmem:[#allocation3 + $0x8] sm:$0xff] %vm505, %v504
        %vm508 = vcmp.eq.f32.partialorder %v459, 1.0
        %vm509 = vcmp.eq.f32.partialorder %v460, 1.0
        %v510 = vsel %vm508, %v465, 128
        %v511 = vsel %vm509, %v466, 128
        %v512 = vld [vmem:[#allocation3] sm:$0xff]
        %v513 = vld [vmem:[#allocation3 + $0x8] sm:$0xff]
        %v514 = vand.u32 %v510, 65535
        %v515 = vshra.s32 %v510, 16
        %v516 = vcvt.s32.f32 %v514
        %v517 = vcvt.s32.f32 %v515
        %518 = vmin.xlane.f32.xlu0 %v517
        %v519 = vpop.xlane.xlu0 %518
        %vm520 = vcmp.eq.f32.partialorder %v517, %v519
        %v521 = vsel %vm520, %v516, inf
        %522 = vmin.xlane.f32.xlu0 %v521
        %v523 = vpop.xlane.xlu0 %522
        %v524 = vcvt.f32.s32 %v523
        %v525 = vcvt.f32.s32 %v519
        %v526 = vshll.u32 %v525, 16
        %v527 = vadd.s32 %v526, %v524
        %v528 = vand.u32 %v511, 65535
        %v529 = vshra.s32 %v511, 16
        %v530 = vcvt.s32.f32 %v528
        %v531 = vcvt.s32.f32 %v529
        %532 = vmin.xlane.f32.xlu0 %v531
        %v533 = vpop.xlane.xlu0 %532
        %vm534 = vcmp.eq.f32.partialorder %v531, %v533
        %v535 = vsel %vm534, %v530, inf
        %536 = vmin.xlane.f32.xlu0 %v535
        %v537 = vpop.xlane.xlu0 %536
        %v538 = vcvt.f32.s32 %v537
        %v539 = vcvt.f32.s32 %v533
        %v540 = vshll.u32 %v539, 16
        %v541 = vadd.s32 %v540, %v538
        %vm542 = vcmp.lt.s32.totalorder %v512, %v527
        %v543 = vsel %vm542, %v512, %v527
        %vm544 = vcmp.lt.s32.totalorder %v513, %v541
        %v545 = vsel %vm544, %v513, %v541
        %vm546 = vcmask 15368
        %547 = vst.msk [vmem:[#allocation3] sm:$0xff] %vm546, %v543
        %548 = vst.msk [vmem:[#allocation3 + $0x8] sm:$0xff] %vm546, %v545
        %vm549 = vcmp.eq.f32.partialorder %v459, 2.0
        %vm550 = vcmp.eq.f32.partialorder %v460, 2.0
        %v551 = vsel %vm549, %v465, 128
        %v552 = vsel %vm550, %v466, 128
        %v553 = vld [vmem:[#allocation3] sm:$0xff]
        %v554 = vld [vmem:[#allocation3 + $0x8] sm:$0xff]
        %v555 = vand.u32 %v551, 65535
        %v556 = vshra.s32 %v551, 16
        %v557 = vcvt.s32.f32 %v555
        %v558 = vcvt.s32.f32 %v556
        %559 = vmin.xlane.f32.xlu0 %v558
        %v560 = vpop.xlane.xlu0 %559
        %vm561 = vcmp.eq.f32.partialorder %v558, %v560
        %v562 = vsel %vm561, %v557, inf
        %563 = vmin.xlane.f32.xlu0 %v562
        %v564 = vpop.xlane.xlu0 %563
        %v565 = vcvt.f32.s32 %v564
        %v566 = vcvt.f32.s32 %v560
        %v567 = vshll.u32 %v566, 16
        %v568 = vadd.s32 %v567, %v565
        %v569 = vand.u32 %v552, 65535
        %v570 = vshra.s32 %v552, 16
        %v571 = vcvt.s32.f32 %v569
        %v572 = vcvt.s32.f32 %v570
        %573 = vmin.xlane.f32.xlu0 %v572
        %v574 = vpop.xlane.xlu0 %573
        %vm575 = vcmp.eq.f32.partialorder %v572, %v574
        %v576 = vsel %vm575, %v571, inf
        %577 = vmin.xlane.f32.xlu0 %v576
        %v578 = vpop.xlane.xlu0 %577
        %v579 = vcvt.f32.s32 %v578
        %v580 = vcvt.f32.s32 %v574
        %v581 = vshll.u32 %v580, 16
        %v582 = vadd.s32 %v581, %v579
        %vm583 = vcmp.lt.s32.totalorder %v553, %v568
        %v584 = vsel %vm583, %v553, %v568
        %vm585 = vcmp.lt.s32.totalorder %v554, %v582
        %v586 = vsel %vm585, %v554, %v582
        %vm587 = vcmask 23568
        %588 = vst.msk [vmem:[#allocation3] sm:$0xff] %vm587, %v584
        %589 = vst.msk [vmem:[#allocation3 + $0x8] sm:$0xff] %vm587, %v586
        %vm590 = vcmp.eq.f32.partialorder %v459, 3.0
        %vm591 = vcmp.eq.f32.partialorder %v460, 3.0
        %v592 = vsel %vm590, %v465, 128
        %v593 = vsel %vm591, %v466, 128
        %v594 = vld [vmem:[#allocation3] sm:$0xff]
        %v595 = vld [vmem:[#allocation3 + $0x8] sm:$0xff]
        %v596 = vand.u32 %v592, 65535
        %v597 = vshra.s32 %v592, 16
        %v598 = vcvt.s32.f32 %v596
        %v599 = vcvt.s32.f32 %v597
        %600 = vmin.xlane.f32.xlu0 %v599
        %v601 = vpop.xlane.xlu0 %600
        %vm602 = vcmp.eq.f32.partialorder %v599, %v601
        %v603 = vsel %vm602, %v598, inf
        %604 = vmin.xlane.f32.xlu0 %v603
        %v605 = vpop.xlane.xlu0 %604
        %v606 = vcvt.f32.s32 %v605
        %v607 = vcvt.f32.s32 %v601
        %v608 = vshll.u32 %v607, 16
        %v609 = vadd.s32 %v608, %v606
        %v610 = vand.u32 %v593, 65535
        %v611 = vshra.s32 %v593, 16
        %v612 = vcvt.s32.f32 %v610
        %v613 = vcvt.s32.f32 %v611
        %614 = vmin.xlane.f32.xlu0 %v613
        %v615 = vpop.xlane.xlu0 %614
        %vm616 = vcmp.eq.f32.partialorder %v613, %v615
        %v617 = vsel %vm616, %v612, inf
        %618 = vmin.xlane.f32.xlu0 %v617
        %v619 = vpop.xlane.xlu0 %618
        %v620 = vcvt.f32.s32 %v619
        %v621 = vcvt.f32.s32 %v615
        %v622 = vshll.u32 %v621, 16
        %v623 = vadd.s32 %v622, %v620
        %vm624 = vcmp.lt.s32.totalorder %v594, %v609
        %v625 = vsel %vm624, %v594, %v609
        %vm626 = vcmp.lt.s32.totalorder %v595, %v623
        %v627 = vsel %vm626, %v595, %v623
        %vm628 = vcmask 31768
        %629 = vst.msk [vmem:[#allocation3] sm:$0xff] %vm628, %v625
        %630 = vst.msk [vmem:[#allocation3 + $0x8] sm:$0xff] %vm628, %v627
        %vm631 = vcmp.eq.f32.partialorder %v459, 4.0
        %vm632 = vcmp.eq.f32.partialorder %v460, 4.0
        %v633 = vsel %vm631, %v465, 128
        %v634 = vsel %vm632, %v466, 128
        %v635 = vld [vmem:[#allocation3] sm:$0xff]
        %v636 = vld [vmem:[#allocation3 + $0x8] sm:$0xff]
        %v637 = vand.u32 %v633, 65535
        %v638 = vshra.s32 %v633, 16
        %v639 = vcvt.s32.f32 %v637
        %v640 = vcvt.s32.f32 %v638
        %641 = vmin.xlane.f32.xlu0 %v640
        %v642 = vpop.xlane.xlu0 %641
        %vm643 = vcmp.eq.f32.partialorder %v640, %v642
        %v644 = vsel %vm643, %v639, inf
        %645 = vmin.xlane.f32.xlu0 %v644
        %v646 = vpop.xlane.xlu0 %645
        %v647 = vcvt.f32.s32 %v646
        %v648 = vcvt.f32.s32 %v642
        %v649 = vshll.u32 %v648, 16
        %v650 = vadd.s32 %v649, %v647
        %v651 = vand.u32 %v634, 65535
        %v652 = vshra.s32 %v634, 16
        %v653 = vcvt.s32.f32 %v651
        %v654 = vcvt.s32.f32 %v652
        %655 = vmin.xlane.f32.xlu0 %v654
        %v656 = vpop.xlane.xlu0 %655
        %vm657 = vcmp.eq.f32.partialorder %v654, %v656
        %v658 = vsel %vm657, %v653, inf
        %659 = vmin.xlane.f32.xlu0 %v658
        %v660 = vpop.xlane.xlu0 %659
        %v661 = vcvt.f32.s32 %v660
        %v662 = vcvt.f32.s32 %v656
        %v663 = vshll.u32 %v662, 16
        %v664 = vadd.s32 %v663, %v661
        %vm665 = vcmp.lt.s32.totalorder %v635, %v650
        %v666 = vsel %vm665, %v635, %v650
        %vm667 = vcmp.lt.s32.totalorder %v636, %v664
        %v668 = vsel %vm667, %v636, %v664
        %vm669 = vcmask 39968
        %670 = vst.msk [vmem:[#allocation3] sm:$0xff] %vm669, %v666
        %671 = vst.msk [vmem:[#allocation3 + $0x8] sm:$0xff] %vm669, %v668
        %vm672 = vcmp.eq.f32.partialorder %v459, 5.0
        %vm673 = vcmp.eq.f32.partialorder %v460, 5.0
        %v674 = vsel %vm672, %v465, 128
        %v675 = vsel %vm673, %v466, 128
        %v676 = vld [vmem:[#allocation3] sm:$0xff]
        %v677 = vld [vmem:[#allocation3 + $0x8] sm:$0xff]
        %v678 = vand.u32 %v674, 65535
        %v679 = vshra.s32 %v674, 16
        %v680 = vcvt.s32.f32 %v678
        %v681 = vcvt.s32.f32 %v679
        %682 = vmin.xlane.f32.xlu0 %v681
        %v683 = vpop.xlane.xlu0 %682
        %vm684 = vcmp.eq.f32.partialorder %v681, %v683
        %v685 = vsel %vm684, %v680, inf
        %686 = vmin.xlane.f32.xlu0 %v685
        %v687 = vpop.xlane.xlu0 %686
        %v688 = vcvt.f32.s32 %v687
        %v689 = vcvt.f32.s32 %v683
        %v690 = vshll.u32 %v689, 16
        %v691 = vadd.s32 %v690, %v688
        %v692 = vand.u32 %v675, 65535
        %v693 = vshra.s32 %v675, 16
        %v694 = vcvt.s32.f32 %v692
        %v695 = vcvt.s32.f32 %v693
        %696 = vmin.xlane.f32.xlu0 %v695
        %v697 = vpop.xlane.xlu0 %696
        %vm698 = vcmp.eq.f32.partialorder %v695, %v697
        %v699 = vsel %vm698, %v694, inf
        %700 = vmin.xlane.f32.xlu0 %v699
        %v701 = vpop.xlane.xlu0 %700
        %v702 = vcvt.f32.s32 %v701
        %v703 = vcvt.f32.s32 %v697
        %v704 = vshll.u32 %v703, 16
        %v705 = vadd.s32 %v704, %v702
        %vm706 = vcmp.lt.s32.totalorder %v676, %v691
        %v707 = vsel %vm706, %v676, %v691
        %vm708 = vcmp.lt.s32.totalorder %v677, %v705
        %v709 = vsel %vm708, %v677, %v705
        %vm710 = vcmask 48168
        %711 = vst.msk [vmem:[#allocation3] sm:$0xff] %vm710, %v707
        %712 = vst.msk [vmem:[#allocation3 + $0x8] sm:$0xff] %vm710, %v709
        %vm713 = vcmp.eq.f32.partialorder %v459, 6.0
        %vm714 = vcmp.eq.f32.partialorder %v460, 6.0
        %v715 = vsel %vm713, %v465, 128
        %v716 = vsel %vm714, %v466, 128
        %v717 = vld [vmem:[#allocation3] sm:$0xff]
        %v718 = vld [vmem:[#allocation3 + $0x8] sm:$0xff]
        %v719 = vand.u32 %v715, 65535
        %v720 = vshra.s32 %v715, 16
        %v721 = vcvt.s32.f32 %v719
        %v722 = vcvt.s32.f32 %v720
        %723 = vmin.xlane.f32.xlu0 %v722
        %v724 = vpop.xlane.xlu0 %723
        %vm725 = vcmp.eq.f32.partialorder %v722, %v724
        %v726 = vsel %vm725, %v721, inf
        %727 = vmin.xlane.f32.xlu0 %v726
        %v728 = vpop.xlane.xlu0 %727
        %v729 = vcvt.f32.s32 %v728
        %v730 = vcvt.f32.s32 %v724
        %v731 = vshll.u32 %v730, 16
        %v732 = vadd.s32 %v731, %v729
        %v733 = vand.u32 %v716, 65535
        %v734 = vshra.s32 %v716, 16
        %v735 = vcvt.s32.f32 %v733
        %v736 = vcvt.s32.f32 %v734
        %737 = vmin.xlane.f32.xlu0 %v736
        %v738 = vpop.xlane.xlu0 %737
        %vm739 = vcmp.eq.f32.partialorder %v736, %v738
        %v740 = vsel %vm739, %v735, inf
        %741 = vmin.xlane.f32.xlu0 %v740
        %v742 = vpop.xlane.xlu0 %741
        %v743 = vcvt.f32.s32 %v742
        %v744 = vcvt.f32.s32 %v738
        %v745 = vshll.u32 %v744, 16
        %v746 = vadd.s32 %v745, %v743
        %vm747 = vcmp.lt.s32.totalorder %v717, %v732
        %v748 = vsel %vm747, %v717, %v732
        %vm749 = vcmp.lt.s32.totalorder %v718, %v746
        %v750 = vsel %vm749, %v718, %v746
        %vm751 = vcmask 56368
        %752 = vst.msk [vmem:[#allocation3] sm:$0xff] %vm751, %v748
        %753 = vst.msk [vmem:[#allocation3 + $0x8] sm:$0xff] %vm751, %v750
        %vm754 = vcmp.eq.f32.partialorder %v459, 7.0
        %vm755 = vcmp.eq.f32.partialorder %v460, 7.0
        %v756 = vsel %vm754, %v465, 128
        %v757 = vsel %vm755, %v466, 128
        %v758 = vld [vmem:[#allocation3] sm:$0xff]
        %v759 = vld [vmem:[#allocation3 + $0x8] sm:$0xff]
        %v760 = vand.u32 %v756, 65535
        %v761 = vshra.s32 %v756, 16
        %v762 = vcvt.s32.f32 %v760
        %v763 = vcvt.s32.f32 %v761
        %764 = vmin.xlane.f32.xlu0 %v763
        %v765 = vpop.xlane.xlu0 %764
        %vm766 = vcmp.eq.f32.partialorder %v763, %v765
        %v767 = vsel %vm766, %v762, inf
        %768 = vmin.xlane.f32.xlu0 %v767
        %v769 = vpop.xlane.xlu0 %768
        %v770 = vcvt.f32.s32 %v769
        %v771 = vcvt.f32.s32 %v765
        %v772 = vshll.u32 %v771, 16
        %v773 = vadd.s32 %v772, %v770
        %v774 = vand.u32 %v757, 65535
        %v775 = vshra.s32 %v757, 16
        %v776 = vcvt.s32.f32 %v774
        %v777 = vcvt.s32.f32 %v775
        %778 = vmin.xlane.f32.xlu0 %v777
        %v779 = vpop.xlane.xlu0 %778
        %vm780 = vcmp.eq.f32.partialorder %v777, %v779
        %v781 = vsel %vm780, %v776, inf
        %782 = vmin.xlane.f32.xlu0 %v781
        %v783 = vpop.xlane.xlu0 %782
        %v784 = vcvt.f32.s32 %v783
        %v785 = vcvt.f32.s32 %v779
        %v786 = vshll.u32 %v785, 16
        %v787 = vadd.s32 %v786, %v784
        %vm788 = vcmp.lt.s32.totalorder %v758, %v773
        %v789 = vsel %vm788, %v758, %v773
        %vm790 = vcmp.lt.s32.totalorder %v759, %v787
        %v791 = vsel %vm790, %v759, %v787
        %vm792 = vcmask 64568
        %793 = vst.msk [vmem:[#allocation3] sm:$0xff] %vm792, %v789
        %794 = vst.msk [vmem:[#allocation3 + $0x8] sm:$0xff] %vm792, %v791
        %vm795 = vcmp.eq.f32.partialorder %v459, 8.0
        %vm796 = vcmp.eq.f32.partialorder %v460, 8.0
        %v797 = vsel %vm795, %v465, 128
        %v798 = vsel %vm796, %v466, 128
        %v799 = vld [vmem:[#allocation3] sm:$0xff]
        %v800 = vld [vmem:[#allocation3 + $0x8] sm:$0xff]
        %v801 = vand.u32 %v797, 65535
        %v802 = vshra.s32 %v797, 16
        %v803 = vcvt.s32.f32 %v801
        %v804 = vcvt.s32.f32 %v802
        %805 = vmin.xlane.f32.xlu0 %v804
        %v806 = vpop.xlane.xlu0 %805
        %vm807 = vcmp.eq.f32.partialorder %v804, %v806
        %v808 = vsel %vm807, %v803, inf
        %809 = vmin.xlane.f32.xlu0 %v808
        %v810 = vpop.xlane.xlu0 %809
        %v811 = vcvt.f32.s32 %v810
        %v812 = vcvt.f32.s32 %v806
        %v813 = vshll.u32 %v812, 16
        %v814 = vadd.s32 %v813, %v811
        %v815 = vand.u32 %v798, 65535
        %v816 = vshra.s32 %v798, 16
        %v817 = vcvt.s32.f32 %v815
        %v818 = vcvt.s32.f32 %v816
        %819 = vmin.xlane.f32.xlu0 %v818
        %v820 = vpop.xlane.xlu0 %819
        %vm821 = vcmp.eq.f32.partialorder %v818, %v820
        %v822 = vsel %vm821, %v817, inf
        %823 = vmin.xlane.f32.xlu0 %v822
        %v824 = vpop.xlane.xlu0 %823
        %v825 = vcvt.f32.s32 %v824
        %v826 = vcvt.f32.s32 %v820
        %v827 = vshll.u32 %v826, 16
        %v828 = vadd.s32 %v827, %v825
        %vm829 = vcmp.lt.s32.totalorder %v799, %v814
        %v830 = vsel %vm829, %v799, %v814
        %vm831 = vcmp.lt.s32.totalorder %v800, %v828
        %v832 = vsel %vm831, %v800, %v828
        %vm833 = vcmask 72768
        %834 = vst.msk [vmem:[#allocation3] sm:$0xff] %vm833, %v830
        %835 = vst.msk [vmem:[#allocation3 + $0x8] sm:$0xff] %vm833, %v832
        %vm836 = vcmp.eq.f32.partialorder %v459, 9.0
        %vm837 = vcmp.eq.f32.partialorder %v460, 9.0
        %v838 = vsel %vm836, %v465, 128
        %v839 = vsel %vm837, %v466, 128
        %v840 = vld [vmem:[#allocation3] sm:$0xff]
        %v841 = vld [vmem:[#allocation3 + $0x8] sm:$0xff]
        %v842 = vand.u32 %v838, 65535
        %v843 = vshra.s32 %v838, 16
        %v844 = vcvt.s32.f32 %v842
        %v845 = vcvt.s32.f32 %v843
        %846 = vmin.xlane.f32.xlu0 %v845
        %v847 = vpop.xlane.xlu0 %846
        %vm848 = vcmp.eq.f32.partialorder %v845, %v847
        %v849 = vsel %vm848, %v844, inf
        %850 = vmin.xlane.f32.xlu0 %v849
        %v851 = vpop.xlane.xlu0 %850
        %v852 = vcvt.f32.s32 %v851
        %v853 = vcvt.f32.s32 %v847
        %v854 = vshll.u32 %v853, 16
        %v855 = vadd.s32 %v854, %v852
        %v856 = vand.u32 %v839, 65535
        %v857 = vshra.s32 %v839, 16
        %v858 = vcvt.s32.f32 %v856
        %v859 = vcvt.s32.f32 %v857
        %860 = vmin.xlane.f32.xlu0 %v859
        %v861 = vpop.xlane.xlu0 %860
        %vm862 = vcmp.eq.f32.partialorder %v859, %v861
        %v863 = vsel %vm862, %v858, inf
        %864 = vmin.xlane.f32.xlu0 %v863
        %v865 = vpop.xlane.xlu0 %864
        %v866 = vcvt.f32.s32 %v865
        %v867 = vcvt.f32.s32 %v861
        %v868 = vshll.u32 %v867, 16
        %v869 = vadd.s32 %v868, %v866
        %vm870 = vcmp.lt.s32.totalorder %v840, %v855
        %v871 = vsel %vm870, %v840, %v855
        %vm872 = vcmp.lt.s32.totalorder %v841, %v869
        %v873 = vsel %vm872, %v841, %v869
        %vm874 = vcmask 80968
        %875 = vst.msk [vmem:[#allocation3] sm:$0xff] %vm874, %v871
        %876 = vst.msk [vmem:[#allocation3 + $0x8] sm:$0xff] %vm874, %v873
        %vm877 = vcmp.eq.f32.partialorder %v459, 10.0
        %vm878 = vcmp.eq.f32.partialorder %v460, 10.0
        %v879 = vsel %vm877, %v465, 128
        %v880 = vsel %vm878, %v466, 128
        %v881 = vld [vmem:[#allocation3] sm:$0xff]
        %v882 = vld [vmem:[#allocation3 + $0x8] sm:$0xff]
        %v883 = vand.u32 %v879, 65535
        %v884 = vshra.s32 %v879, 16
        %v885 = vcvt.s32.f32 %v883
        %v886 = vcvt.s32.f32 %v884
        %887 = vmin.xlane.f32.xlu0 %v886
        %v888 = vpop.xlane.xlu0 %887
        %vm889 = vcmp.eq.f32.partialorder %v886, %v888
        %v890 = vsel %vm889, %v885, inf
        %891 = vmin.xlane.f32.xlu0 %v890
        %v892 = vpop.xlane.xlu0 %891
        %v893 = vcvt.f32.s32 %v892
        %v894 = vcvt.f32.s32 %v888
        %v895 = vshll.u32 %v894, 16
        %v896 = vadd.s32 %v895, %v893
        %v897 = vand.u32 %v880, 65535
        %v898 = vshra.s32 %v880, 16
        %v899 = vcvt.s32.f32 %v897
        %v900 = vcvt.s32.f32 %v898
        %901 = vmin.xlane.f32.xlu0 %v900
        %v902 = vpop.xlane.xlu0 %901
        %vm903 = vcmp.eq.f32.partialorder %v900, %v902
        %v904 = vsel %vm903, %v899, inf
        %905 = vmin.xlane.f32.xlu0 %v904
        %v906 = vpop.xlane.xlu0 %905
        %v907 = vcvt.f32.s32 %v906
        %v908 = vcvt.f32.s32 %v902
        %v909 = vshll.u32 %v908, 16
        %v910 = vadd.s32 %v909, %v907
        %vm911 = vcmp.lt.s32.totalorder %v881, %v896
        %v912 = vsel %vm911, %v881, %v896
        %vm913 = vcmp.lt.s32.totalorder %v882, %v910
        %v914 = vsel %vm913, %v882, %v910
        %vm915 = vcmask 89168
        %916 = vst.msk [vmem:[#allocation3] sm:$0xff] %vm915, %v912
        %917 = vst.msk [vmem:[#allocation3 + $0x8] sm:$0xff] %vm915, %v914
        %vm918 = vcmp.eq.f32.partialorder %v459, 11.0
        %vm919 = vcmp.eq.f32.partialorder %v460, 11.0
        %v920 = vsel %vm918, %v465, 128
        %v921 = vsel %vm919, %v466, 128
        %v922 = vld [vmem:[#allocation3] sm:$0xff]
        %v923 = vld [vmem:[#allocation3 + $0x8] sm:$0xff]
        %v924 = vand.u32 %v920, 65535
        %v925 = vshra.s32 %v920, 16
        %v926 = vcvt.s32.f32 %v924
        %v927 = vcvt.s32.f32 %v925
        %928 = vmin.xlane.f32.xlu0 %v927
        %v929 = vpop.xlane.xlu0 %928
        %vm930 = vcmp.eq.f32.partialorder %v927, %v929
        %v931 = vsel %vm930, %v926, inf
        %932 = vmin.xlane.f32.xlu0 %v931
        %v933 = vpop.xlane.xlu0 %932
        %v934 = vcvt.f32.s32 %v933
        %v935 = vcvt.f32.s32 %v929
        %v936 = vshll.u32 %v935, 16
        %v937 = vadd.s32 %v936, %v934
        %v938 = vand.u32 %v921, 65535
        %v939 = vshra.s32 %v921, 16
        %v940 = vcvt.s32.f32 %v938
        %v941 = vcvt.s32.f32 %v939
        %942 = vmin.xlane.f32.xlu0 %v941
        %v943 = vpop.xlane.xlu0 %942
        %vm944 = vcmp.eq.f32.partialorder %v941, %v943
        %v945 = vsel %vm944, %v940, inf
        %946 = vmin.xlane.f32.xlu0 %v945
        %v947 = vpop.xlane.xlu0 %946
        %v948 = vcvt.f32.s32 %v947
        %v949 = vcvt.f32.s32 %v943
        %v950 = vshll.u32 %v949, 16
        %v951 = vadd.s32 %v950, %v948
        %vm952 = vcmp.lt.s32.totalorder %v922, %v937
        %v953 = vsel %vm952, %v922, %v937
        %vm954 = vcmp.lt.s32.totalorder %v923, %v951
        %v955 = vsel %vm954, %v923, %v951
        %vm956 = vcmask 97368
        %957 = vst.msk [vmem:[#allocation3] sm:$0xff] %vm956, %v953
        %958 = vst.msk [vmem:[#allocation3 + $0x8] sm:$0xff] %vm956, %v955
        %vm959 = vcmp.eq.f32.partialorder %v459, 12.0
        %vm960 = vcmp.eq.f32.partialorder %v460, 12.0
        %v961 = vsel %vm959, %v465, 128
        %v962 = vsel %vm960, %v466, 128
        %v963 = vld [vmem:[#allocation3] sm:$0xff]
        %v964 = vld [vmem:[#allocation3 + $0x8] sm:$0xff]
        %v965 = vand.u32 %v961, 65535
        %v966 = vshra.s32 %v961, 16
        %v967 = vcvt.s32.f32 %v965
        %v968 = vcvt.s32.f32 %v966
        %969 = vmin.xlane.f32.xlu0 %v968
        %v970 = vpop.xlane.xlu0 %969
        %vm971 = vcmp.eq.f32.partialorder %v968, %v970
        %v972 = vsel %vm971, %v967, inf
        %973 = vmin.xlane.f32.xlu0 %v972
        %v974 = vpop.xlane.xlu0 %973
        %v975 = vcvt.f32.s32 %v974
        %v976 = vcvt.f32.s32 %v970
        %v977 = vshll.u32 %v976, 16
        %v978 = vadd.s32 %v977, %v975
        %v979 = vand.u32 %v962, 65535
        %v980 = vshra.s32 %v962, 16
        %v981 = vcvt.s32.f32 %v979
        %v982 = vcvt.s32.f32 %v980
        %983 = vmin.xlane.f32.xlu0 %v982
        %v984 = vpop.xlane.xlu0 %983
        %vm985 = vcmp.eq.f32.partialorder %v982, %v984
        %v986 = vsel %vm985, %v981, inf
        %987 = vmin.xlane.f32.xlu0 %v986
        %v988 = vpop.xlane.xlu0 %987
        %v989 = vcvt.f32.s32 %v988
        %v990 = vcvt.f32.s32 %v984
        %v991 = vshll.u32 %v990, 16
        %v992 = vadd.s32 %v991, %v989
        %vm993 = vcmp.lt.s32.totalorder %v963, %v978
        %v994 = vsel %vm993, %v963, %v978
        %vm995 = vcmp.lt.s32.totalorder %v964, %v992
        %v996 = vsel %vm995, %v964, %v992
        %vm997 = vcmask 105568
        %998 = vst.msk [vmem:[#allocation3] sm:$0xff] %vm997, %v994
        %999 = vst.msk [vmem:[#allocation3 + $0x8] sm:$0xff] %vm997, %v996
        %vm1000 = vcmp.eq.f32.partialorder %v459, 13.0
        %vm1001 = vcmp.eq.f32.partialorder %v460, 13.0
        %v1002 = vsel %vm1000, %v465, 128
        %v1003 = vsel %vm1001, %v466, 128
        %v1004 = vld [vmem:[#allocation3] sm:$0xff]
        %v1005 = vld [vmem:[#allocation3 + $0x8] sm:$0xff]
        %v1006 = vand.u32 %v1002, 65535
        %v1007 = vshra.s32 %v1002, 16
        %v1008 = vcvt.s32.f32 %v1006
        %v1009 = vcvt.s32.f32 %v1007
        %1010 = vmin.xlane.f32.xlu0 %v1009
        %v1011 = vpop.xlane.xlu0 %1010
        %vm1012 = vcmp.eq.f32.partialorder %v1009, %v1011
        %v1013 = vsel %vm1012, %v1008, inf
        %1014 = vmin.xlane.f32.xlu0 %v1013
        %v1015 = vpop.xlane.xlu0 %1014
        %v1016 = vcvt.f32.s32 %v1015
        %v1017 = vcvt.f32.s32 %v1011
        %v1018 = vshll.u32 %v1017, 16
        %v1019 = vadd.s32 %v1018, %v1016
        %v1020 = vand.u32 %v1003, 65535
        %v1021 = vshra.s32 %v1003, 16
        %v1022 = vcvt.s32.f32 %v1020
        %v1023 = vcvt.s32.f32 %v1021
        %1024 = vmin.xlane.f32.xlu0 %v1023
        %v1025 = vpop.xlane.xlu0 %1024
        %vm1026 = vcmp.eq.f32.partialorder %v1023, %v1025
        %v1027 = vsel %vm1026, %v1022, inf
        %1028 = vmin.xlane.f32.xlu0 %v1027
        %v1029 = vpop.xlane.xlu0 %1028
        %v1030 = vcvt.f32.s32 %v1029
        %v1031 = vcvt.f32.s32 %v1025
        %v1032 = vshll.u32 %v1031, 16
        %v1033 = vadd.s32 %v1032, %v1030
        %vm1034 = vcmp.lt.s32.totalorder %v1004, %v1019
        %v1035 = vsel %vm1034, %v1004, %v1019
        %vm1036 = vcmp.lt.s32.totalorder %v1005, %v1033
        %v1037 = vsel %vm1036, %v1005, %v1033
        %vm1038 = vcmask 113768
        %1039 = vst.msk [vmem:[#allocation3] sm:$0xff] %vm1038, %v1035
        %1040 = vst.msk [vmem:[#allocation3 + $0x8] sm:$0xff] %vm1038, %v1037
        %vm1041 = vcmp.eq.f32.partialorder %v459, 14.0
        %vm1042 = vcmp.eq.f32.partialorder %v460, 14.0
        %v1043 = vsel %vm1041, %v465, 128
        %v1044 = vsel %vm1042, %v466, 128
        %v1045 = vld [vmem:[#allocation3] sm:$0xff]
        %v1046 = vld [vmem:[#allocation3 + $0x8] sm:$0xff]
        %v1047 = vand.u32 %v1043, 65535
        %v1048 = vshra.s32 %v1043, 16
        %v1049 = vcvt.s32.f32 %v1047
        %v1050 = vcvt.s32.f32 %v1048
        %1051 = vmin.xlane.f32.xlu0 %v1050
        %v1052 = vpop.xlane.xlu0 %1051
        %vm1053 = vcmp.eq.f32.partialorder %v1050, %v1052
        %v1054 = vsel %vm1053, %v1049, inf
        %1055 = vmin.xlane.f32.xlu0 %v1054
        %v1056 = vpop.xlane.xlu0 %1055
        %v1057 = vcvt.f32.s32 %v1056
        %v1058 = vcvt.f32.s32 %v1052
        %v1059 = vshll.u32 %v1058, 16
        %v1060 = vadd.s32 %v1059, %v1057
        %v1061 = vand.u32 %v1044, 65535
        %v1062 = vshra.s32 %v1044, 16
        %v1063 = vcvt.s32.f32 %v1061
        %v1064 = vcvt.s32.f32 %v1062
        %1065 = vmin.xlane.f32.xlu0 %v1064
        %v1066 = vpop.xlane.xlu0 %1065
        %vm1067 = vcmp.eq.f32.partialorder %v1064, %v1066
        %v1068 = vsel %vm1067, %v1063, inf
        %1069 = vmin.xlane.f32.xlu0 %v1068
        %v1070 = vpop.xlane.xlu0 %1069
        %v1071 = vcvt.f32.s32 %v1070
        %v1072 = vcvt.f32.s32 %v1066
        %v1073 = vshll.u32 %v1072, 16
        %v1074 = vadd.s32 %v1073, %v1071
        %vm1075 = vcmp.lt.s32.totalorder %v1045, %v1060
        %v1076 = vsel %vm1075, %v1045, %v1060
        %vm1077 = vcmp.lt.s32.totalorder %v1046, %v1074
        %v1078 = vsel %vm1077, %v1046, %v1074
        %vm1079 = vcmask 121968
        %1080 = vst.msk [vmem:[#allocation3] sm:$0xff] %vm1079, %v1076
        %1081 = vst.msk [vmem:[#allocation3 + $0x8] sm:$0xff] %vm1079, %v1078
        %vm1082 = vcmp.eq.f32.partialorder %v459, 15.0
        %vm1083 = vcmp.eq.f32.partialorder %v460, 15.0
        %v1084 = vsel %vm1082, %v465, 128
        %v1085 = vsel %vm1083, %v466, 128
        %v1086 = vld [vmem:[#allocation3] sm:$0xff]
        %v1087 = vld [vmem:[#allocation3 + $0x8] sm:$0xff]
        %v1088 = vand.u32 %v1084, 65535
        %v1089 = vshra.s32 %v1084, 16
        %v1090 = vcvt.s32.f32 %v1088
        %v1091 = vcvt.s32.f32 %v1089
        %1092 = vmin.xlane.f32.xlu0 %v1091
        %v1093 = vpop.xlane.xlu0 %1092
        %vm1094 = vcmp.eq.f32.partialorder %v1091, %v1093
        %v1095 = vsel %vm1094, %v1090, inf
        %1096 = vmin.xlane.f32.xlu0 %v1095
        %v1097 = vpop.xlane.xlu0 %1096
        %v1098 = vcvt.f32.s32 %v1097
        %v1099 = vcvt.f32.s32 %v1093
        %v1100 = vshll.u32 %v1099, 16
        %v1101 = vadd.s32 %v1100, %v1098
        %v1102 = vand.u32 %v1085, 65535
        %v1103 = vshra.s32 %v1085, 16
        %v1104 = vcvt.s32.f32 %v1102
        %v1105 = vcvt.s32.f32 %v1103
        %1106 = vmin.xlane.f32.xlu0 %v1105
        %v1107 = vpop.xlane.xlu0 %1106
        %vm1108 = vcmp.eq.f32.partialorder %v1105, %v1107
        %v1109 = vsel %vm1108, %v1104, inf
        %1110 = vmin.xlane.f32.xlu0 %v1109
        %v1111 = vpop.xlane.xlu0 %1110
        %v1112 = vcvt.f32.s32 %v1111
        %v1113 = vcvt.f32.s32 %v1107
        %v1114 = vshll.u32 %v1113, 16
        %v1115 = vadd.s32 %v1114, %v1112
        %vm1116 = vcmp.lt.s32.totalorder %v1086, %v1101
        %v1117 = vsel %vm1116, %v1086, %v1101
        %vm1118 = vcmp.lt.s32.totalorder %v1087, %v1115
        %v1119 = vsel %vm1118, %v1087, %v1115
        %vm1120 = vcmask 130168
        %1121 = vst.msk [vmem:[#allocation3] sm:$0xff] %vm1120, %v1117
        %1122 = vst.msk [vmem:[#allocation3 + $0x8] sm:$0xff] %vm1120, %v1119
        %v1123 = vadd.f32 %v459, %v339
        %v1124 = vadd.f32 %v460, %v340
        %1127 = vrot.lane.b32.xlu0 %v1123, 1
        %v1128 = vpop.permute.xlu0 %1127
        %1129 = vrot.lane.b32.xlu0 %v1124, 1
        %v1130 = vpop.permute.xlu0 %1129
        %1133 = vst.msk [vmem:[#allocation2] sm:$0xff] %vm505, %v1128
        %1134 = vst.msk [vmem:[#allocation2 + $0x8] sm:$0xff] %vm505, %v1130
        // Predicated region
        $region41: #{tpu_custom_call.1} parent=31 // pred_check
          %p1135 = pneg %p251
        $region42: #{tpu_custom_call.1} parent=31 // pred_check_branch
          %1137 = sbr.rel (%p1135) target = $region44
        $region43: #{tpu_custom_call.1} parent=31 // pred_region
          %v1138 = vld [vmem:[#allocation3] sm:$0xff]
          %v1139 = vld [vmem:[#allocation3 + $0x8] sm:$0xff]
          %vm1140 = vcmp.eq.s32.totalorder %v1138, 128
          %vm1141 = vcmp.eq.s32.totalorder %v1139, 128
          %1142 = vset.pattern.permute.xlu0 0
          %1143 = vperm.xlu0 %1142, %v1138
          %v1144 = vpop.permute.xlu0 %1143
          %1145 = vset.pattern.permute.xlu0 0
          %1146 = vperm.xlu0 %1145, %v1139
          %v1147 = vpop.permute.xlu0 %1146
          %v1148 = vsel %vm1140, %v1144, %v1138
          %v1149 = vsel %vm1141, %v1147, %v1139
          %1150 = vst [vmem:[%s231] sm:$0xff] %v1148
          %1151 = vst [vmem:[%s231 + $0x8] sm:$0xff] %v1149
        $region44: #{tpu_custom_call.1} parent=31 // pred_fallthru
          _
        %s1152 = sand.u32 %s124, 1
        %s1153 = scalar_lea.sflag [#allocation7], %s1152
        %s1154 = sand.u32 %s124, 1
        %s1155 = smul.addr %s1154, 16
        %s1156 = scalar_lea.vmem [#allocation8], %s1155
        // Predicated region
        $region45: #{tpu_custom_call.1} parent=31 // pred_check
          %p1157 = pneg %p134
        $region46: #{tpu_custom_call.1} parent=31 // pred_check_branch
          %1159 = sbr.rel (%p1157) target = $region48
        $region47: #{tpu_custom_call.1} parent=31 // pred_region
          %s1160 = smul.u32 2, %s24
          %s1162 = ssub.s32 256, 256
          %1163 = vsyncadd %s1153, %s1162
          %s1164 = smul.addr %s23, 2
          %s1165 = sadd.s32 %s1160, %s1164
          %s1166 = smul.addr %s1165, 128
          %s1167 = scalar_lea.hbm %s3, %s1166
          %s1168 = sshll.u32 %s1156, 4
          %s1169 = int_to_ptr.vmem [resolvable:$true] %s1168
          %1174 = dma.vmem_to_hbm [thread:$0]  %s1169, 256, %s1167, %s1153, 128, 128, 8
        $region48: #{tpu_custom_call.1} parent=31 // pred_fallthru
          _
      $region32: #{tpu_custom_call.1} parent=5 // pred_fallthru
        _
      %p1175 = scmp.le.s32.totalorder 2, %s13
      // Predicated region
      $region49: #{tpu_custom_call.1} parent=5 // pred_check
        %p1176 = pneg %p1175
      $region50: #{tpu_custom_call.1} parent=5 // pred_check_branch
        %1178 = sbr.rel (%p1176) target = $region52
      $region51: #{tpu_custom_call.1} parent=5 // pred_region
        %s1179 = ssub.s32 %s13, 2
        // Predicated region
        $region53: #{tpu_custom_call.1} parent=51 // pred_check
          %p1180 = pneg %p140
        $region54: #{tpu_custom_call.1} parent=51 // pred_check_branch
          %1182 = sbr.rel (%p1180) target = $region56
        $region55: #{tpu_custom_call.1} parent=51 // pred_region
          %s1183 = sand.u32 %s125, 1
          %s1184 = scalar_lea.sflag [#allocation7], %s1183
          %s1185 = sand.u32 %s125, 1
          %s1186 = smul.addr %s1185, 16
          %s1187 = scalar_lea.vmem [#allocation8], %s1186
          %1188 = dma.done %s1184, 256
        $region56: #{tpu_custom_call.1} parent=51 // pred_fallthru
          _
      $region52: #{tpu_custom_call.1} parent=5 // pred_fallthru
        _
    $region6: #{tpu_custom_call.1} parent=1 // loop_footer
      %s17 = sadd.s32 1, %s13
    $region7: #{tpu_custom_call.1} parent=1 // loop_footer_branch
      %12 = sbr.rel target = $region3
    $region8: #{tpu_custom_call.1} parent=1 // loop_exit
      _
    %1189 = vsyncpa [#allocation6], 1
    %s1190 = scalar_lea.sflag [#allocation6], 1
    %1191 = vsyncpa %s1190, 1
    %1192 = vsyncpa [#allocation7], 1
    %s1193 = scalar_lea.sflag [#allocation7], 1
    %1194 = vsyncpa %s1193, 1

</llo_original>
